<compile_context>
chip_gen: v6e
topology: v6e:2x2x1
jax: 0.10.0
libtpu: 0.0.40
codegen_flags: <defaults>
</compile_context>

<pallas_src>
import functools
import math

import jax
import jax.numpy as jnp
from jax.experimental import pallas as pl
from jax.experimental.pallas import tpu as pltpu


# ----------------------------------------------------------------------------- helpers
def _layernorm(x, w, b, eps=1e-6):
    mu = jnp.mean(x, axis=-1, keepdims=True)
    var = jnp.mean(jnp.square(x - mu), axis=-1, keepdims=True)
    return (x - mu) * jax.lax.rsqrt(var + eps) * w + b


def _silu(x):
    return x * jax.nn.sigmoid(x)


def _compiler_params(num_parallel_axes):
    """parallel grid axes + an explicit per-generation VMEM budget (~3/4 of capacity)."""
    kwargs = dict(dimension_semantics=("parallel",) * num_parallel_axes)
    try:
        cap = getattr(pltpu.get_tpu_info(), "vmem_capacity_bytes", None)
        if cap:
            kwargs["vmem_limit_bytes"] = min(int(cap) * 3 // 4, 100 * 1024 * 1024)
    except Exception:
        pass  # fall back to the compiler default scoped-VMEM limit
    return pltpu.CompilerParams(**kwargs)


# ----------------------------------------------------------------------------- kernel 1
def _qkv_kernel(x_ref, ln1w_ref, ln1b_ref, wqkv_ref, bqkv_ref,
                q_ref, k_ref, v_ref, *, num_heads, head_dim, scale):
    """LN1 + fused QKV projection for one (batch, query-tile) block.

    Outputs q/k/v in heads-leading (H, TQ, D) layout (q pre-scaled by 1/sqrt(D)).
    With head_dim a multiple of 128 the per-head column slices / stores are
    lane-tile aligned, so the head split costs no relayout.
    """
    x = x_ref[0].astype(jnp.float32)                                   # (TQ, hidden)
    hidden = x.shape[-1]
    nx = _layernorm(x, ln1w_ref[...].astype(jnp.float32),
                    ln1b_ref[...].astype(jnp.float32))
    qkv = jnp.dot(nx.astype(jnp.bfloat16), wqkv_ref[...],
                  preferred_element_type=jnp.float32)                  # (TQ, 3*hidden)
    qkv = qkv + bqkv_ref[...].astype(jnp.float32)
    # qk_norm=False -> q/k norms are nn.Identity.
    for h in range(num_heads):                                         # stores only; all matmuls stay batched
        lo = h * head_dim
        q_ref[0, h] = (qkv[:, lo:lo + head_dim] * scale).astype(q_ref.dtype)
        k_ref[0, h] = qkv[:, hidden + lo:hidden + lo + head_dim].astype(k_ref.dtype)
        v_ref[0, h] = qkv[:, 2 * hidden + lo:2 * hidden + lo + head_dim].astype(v_ref.dtype)


# ----------------------------------------------------------------------------- kernel 2
def _attn_mlp_kernel(vl_ref, x_ref, q_ref, k_ref, v_ref, gmsa_ref, gmlp_ref,
                     wproj_ref, bproj_ref, ln2w_ref, ln2b_ref,
                     w1_ref, b1_ref, w2_ref, b2_ref, o_ref, *, use_mask):
    b = pl.program_id(0)
    x = x_ref[0].astype(jnp.float32)            # (TQ, hidden)  residual stream (f32)
    q = q_ref[0]                                # (H, TQ, D)    bf16, pre-scaled by 1/sqrt(D)
    k = k_ref[0]                                # (H, L,  D)    bf16
    v = v_ref[0]                                # (H, L,  D)    bf16
    num_heads = q.shape[0]

    # ---- heads-batched attention (single batched matmuls on the MXU) ----
    s = jnp.einsum("hqd,hkd->hqk", q, k,
                   preferred_element_type=jnp.float32)                 # (H, TQ, L) f32
    if use_mask:
        vl = vl_ref[b]                                                  # valid prefix length for this batch
        key_idx = jax.lax.broadcasted_iota(jnp.int32, s.shape, 2)
        s = s + jnp.where(key_idx < vl, 0.0, -1e9).astype(jnp.float32)
    s = s - jnp.max(s, axis=-1, keepdims=True)
    p = jnp.exp(s)
    p = p * pl.reciprocal(jnp.sum(p, axis=-1, keepdims=True), approx=True)
    attn = jnp.einsum("hqk,hkd->hqd", p.astype(v.dtype), v,
                      preferred_element_type=jnp.float32)               # (H, TQ, D) f32

    # ---- output projection: head-merge folded into per-head W_proj slabs ----
    proj = bproj_ref[...].astype(jnp.float32)                           # (1, hidden), broadcasts
    for h in range(num_heads):
        proj = proj + jnp.dot(attn[h].astype(jnp.bfloat16), wproj_ref[h],
                              preferred_element_type=jnp.float32)       # (TQ, hidden)

    gate_msa = gmsa_ref[0].astype(jnp.float32)                          # (1, hidden)
    x = x + proj * gate_msa                                             # apply_gate(., gate_msa)

    # ---- MLP branch (drop rate 0.0 -> dropout is a no-op) ----
    nx2 = _layernorm(x, ln2w_ref[...].astype(jnp.float32),
                     ln2b_ref[...].astype(jnp.float32))
    h1 = jnp.dot(nx2.astype(jnp.bfloat16), w1_ref[...],
                 preferred_element_type=jnp.float32) + b1_ref[...].astype(jnp.float32)
    h1 = _silu(h1)
    mlp = jnp.dot(h1.astype(jnp.bfloat16), w2_ref[...],
                  preferred_element_type=jnp.float32) + b2_ref[...].astype(jnp.float32)

    gate_mlp = gmlp_ref[0].astype(jnp.float32)
    o_ref[0] = (x + mlp * gate_mlp).astype(o_ref.dtype)                 # apply_gate(., gate_mlp)


# ----------------------------------------------------------------------------- wrapper
def token_refiner_block(x, c, params, num_heads, valid_len=None, tq=128):
    """x: (B, L, hidden), c: (B, hidden).

    valid_len: optional per-batch int valid prefix length (B,) -- keys >= valid_len[b]
    are masked out.  None means attend to everything.
    # TODO(synk): arbitrary dense (B, L, L) attn_mask is not supported in-kernel; only
    # per-batch valid-length prefix masks (which is how the refiner builds its mask).
    """
    B, L, hidden = x.shape
    assert hidden % num_heads == 0
    head_dim = hidden // num_heads
    tq = min(tq, L)
    assert L % tq == 0 and (tq % 8 == 0 or tq == L), (L, tq)
    nq = L // tq
    scale = 1.0 / math.sqrt(head_dim)
    qkv_dtype = jnp.bfloat16
    p = params

    # ---- adaLN gates hoisted out of the kernel (tiny M=1 matmul; done by XLA) ----
    gates = jnp.dot(jax.nn.silu(c.astype(jnp.float32)), p["wada"].astype(jnp.float32),
                    preferred_element_type=jnp.float32) + p["bada"].astype(jnp.float32)
    gate_msa = gates[:, :hidden].reshape(B, 1, hidden)
    gate_mlp = gates[:, hidden:].reshape(B, 1, hidden)

    use_mask = valid_len is not None
    vl = (jnp.asarray(valid_len, jnp.int32) if use_mask
          else jnp.full((B,), L, jnp.int32))

    def const_map(nd):
        return lambda *_: (0,) * nd

    # ---------------- kernel 1: LN1 + fused QKV projection ----------------
    w_list1 = [p["ln1_w"], p["ln1_b"], p["wqkv"], p["bqkv"]]
    in_specs1 = [pl.BlockSpec((1, tq, hidden), lambda b, i: (b, i, 0))]
    in_specs1 += [pl.BlockSpec(w.shape, const_map(w.ndim)) for w in w_list1]
    qkv_out_spec = pl.BlockSpec((1, num_heads, tq, head_dim), lambda b, i: (b, 0, i, 0))
    qkv_shape = jax.ShapeDtypeStruct((B, num_heads, L, head_dim), qkv_dtype)

    q, k, v = pl.pallas_call(
        functools.partial(_qkv_kernel, num_heads=num_heads, head_dim=head_dim, scale=scale),
        out_shape=(qkv_shape, qkv_shape, qkv_shape),
        grid_spec=pltpu.PrefetchScalarGridSpec(
            num_scalar_prefetch=0,
            grid=(B, nq),
            in_specs=in_specs1,
            out_specs=(qkv_out_spec, qkv_out_spec, qkv_out_spec)),
        compiler_params=_compiler_params(2),
    )(x, *w_list1)

    # ---------------- kernel 2: attention + proj + gated residual + LN2 + MLP ----------------
    wproj_r = p["wproj"].reshape(num_heads, head_dim, hidden)   # per-head projection slabs
    w_list2 = [wproj_r, p["bproj"], p["ln2_w"], p["ln2_b"],
               p["w1"], p["b1"], p["w2"], p["b2"]]
    in_specs2 = [
        pl.BlockSpec((1, tq, hidden), lambda b, i, _vl: (b, i, 0)),                    # x (residual)
        pl.BlockSpec((1, num_heads, tq, head_dim), lambda b, i, _vl: (b, 0, i, 0)),    # q tile
        pl.BlockSpec((1, num_heads, L, head_dim), lambda b, i, _vl: (b, 0, 0, 0)),     # k (full seq)
        pl.BlockSpec((1, num_heads, L, head_dim), lambda b, i, _vl: (b, 0, 0, 0)),     # v (full seq)
        pl.BlockSpec((1, 1, hidden), lambda b, i, _vl: (b, 0, 0)),                     # gate_msa
        pl.BlockSpec((1, 1, hidden), lambda b, i, _vl: (b, 0, 0)),                     # gate_mlp
    ] + [pl.BlockSpec(w.shape, const_map(w.ndim)) for w in w_list2]

    out = pl.pallas_call(
        functools.partial(_attn_mlp_kernel, use_mask=use_mask),
        out_shape=jax.ShapeDtypeStruct((B, L, hidden), x.dtype),
        grid_spec=pltpu.PrefetchScalarGridSpec(
            num_scalar_prefetch=1,
            grid=(B, nq),
            in_specs=in_specs2,
            out_specs=pl.BlockSpec((1, tq, hidden), lambda b, i, _vl: (b, i, 0))),
        compiler_params=_compiler_params(2),
    )(vl, x, q, k, v, gate_msa, gate_mlp, *w_list2)
    return out


# ----------------------------------------------------------------------------- params & reference
def init_params(key, hidden, num_heads, mlp_ratio=4.0, dtype=jnp.bfloat16):
    mlp_hidden = int(hidden * mlp_ratio)
    keys = jax.random.split(key, 12)

    def w(k_, din, dout, s=0.02):
        return (s * jax.random.normal(k_, (din, dout), jnp.float32)).astype(dtype)

    def b(k_, dout, s=0.02):
        return (s * jax.random.normal(k_, (1, dout), jnp.float32)).astype(dtype)

    params = {
        "ln1_w": (1.0 + 0.05 * jax.random.normal(keys[0], (1, hidden), jnp.float32)).astype(dtype),
        "ln1_b": (0.02 * jax.random.normal(keys[1], (1, hidden), jnp.float32)).astype(dtype),
        "wqkv": w(keys[2], hidden, 3 * hidden), "bqkv": b(keys[3], 3 * hidden),
        "wproj": w(keys[4], hidden, hidden), "bproj": b(keys[5], hidden),
        "ln2_w": (1.0 + 0.05 * jax.random.normal(keys[6], (1, hidden), jnp.float32)).astype(dtype),
        "ln2_b": (0.02 * jax.random.normal(keys[7], (1, hidden), jnp.float32)).astype(dtype),
        "w1": w(keys[8], hidden, mlp_hidden), "b1": b(keys[9], mlp_hidden),
        "w2": w(keys[10], mlp_hidden, hidden), "b2": b(keys[11], hidden),
        # NOTE: PyTorch __init__ zero-inits adaLN (block would be identity at init);
        # we use non-zero values so the gated residual paths are exercised.
        "wada": w(jax.random.fold_in(key, 100), hidden, 2 * hidden),
        "bada": (0.1 * jax.random.normal(jax.random.fold_in(key, 101),
                                         (1, 2 * hidden), jnp.float32)).astype(dtype),
    }
    return params


def ref_forward(x, c, params, num_heads, valid_len=None):
    """Pure-JAX f32 reference matching the PyTorch forward."""
    B, L, hidden = x.shape
    hd = hidden // num_heads
    f32 = jnp.float32
    p = {name: val.astype(f32) for name, val in params.items()}
    x32, c32 = x.astype(f32), c.astype(f32)

    if valid_len is None:
        bias = jnp.zeros((B, 1, 1, L), f32)
    else:
        key_idx = jnp.arange(L)[None, :]
        bias = jnp.where(key_idx < jnp.asarray(valid_len)[:, None], 0.0, -1e9)
        bias = bias[:, None, None, :].astype(f32)

    def ln(t, wt, bt):
        mu = jnp.mean(t, -1, keepdims=True)
        var = jnp.mean((t - mu) ** 2, -1, keepdims=True)
        return (t - mu) * jax.lax.rsqrt(var + 1e-6) * wt[0] + bt[0]

    silu = lambda t: t * jax.nn.sigmoid(t)
    gates = silu(c32) @ p["wada"] + p["bada"][0]
    gate_msa, gate_mlp = gates[:, :hidden], gates[:, hidden:]
    nx = ln(x32, p["ln1_w"], p["ln1_b"])
    qkv = (nx @ p["wqkv"] + p["bqkv"][0]).reshape(B, L, 3, num_heads, hd)
    q, k, v = qkv[:, :, 0], qkv[:, :, 1], qkv[:, :, 2]
    q, k, v = (jnp.transpose(t, (0, 2, 1, 3)) for t in (q, k, v))
    s = jnp.einsum("bhqd,bhkd->bhqk", q, k) / math.sqrt(hd) + bias
    a = jnp.einsum("bhqk,bhkd->bhqd", jax.nn.softmax(s, axis=-1), v)
    a = jnp.transpose(a, (0, 2, 1, 3)).reshape(B, L, hidden)
    xo = x32 + (a @ p["wproj"] + p["bproj"][0]) * gate_msa[:, None, :]
    nx2 = ln(xo, p["ln2_w"], p["ln2_b"])
    m = silu(nx2 @ p["w1"] + p["b1"][0]) @ p["w2"] + p["b2"][0]
    xo = xo + m * gate_mlp[:, None, :]
    return xo.astype(x.dtype)


# ----------------------------------------------------------------------------- main
if __name__ == "__main__":
    # head_dim = 128 (matches the real refiner's head_dim); 2 query tiles per batch.
    B, L, hidden, num_heads = 2, 64, 256, 2
    key = jax.random.PRNGKey(0)
    kx, kc, kp = jax.random.split(key, 3)
    x = jax.random.normal(kx, (B, L, hidden), jnp.float32)
    c = jax.random.normal(kc, (B, hidden), jnp.float32)
    params = init_params(kp, hidden, num_heads)

    # Masked case (per-batch valid prefix lengths, via scalar prefetch).
    valid_len = jnp.array([L, 40], jnp.int32)
    out_m = jax.block_until_ready(
        token_refiner_block(x, c, params, num_heads, valid_len=valid_len, tq=32))
    ref_m = ref_forward(x, c, params, num_heads, valid_len=valid_len)
    err_m = float(jnp.max(jnp.abs(out_m - ref_m)))

    # Unmasked case.
    out_n = jax.block_until_ready(
        token_refiner_block(x, c, params, num_heads, valid_len=None, tq=32))
    ref_n = ref_forward(x, c, params, num_heads, valid_len=None)
    err_n = float(jnp.max(jnp.abs(out_n - ref_n)))

    assert out_m.shape == (B, L, hidden), out_m.shape
    assert err_m < 5e-2, f"masked: max abs error vs reference: {err_m}"
    assert err_n < 5e-2, f"unmasked: max abs error vs reference: {err_n}"
    print("KERNEL_OK")
</pallas_src>

<mosaic_0001>
module attributes {stable_mosaic.version = 11 : i64} {
  func.func @_qkv_kernel(%arg0: i32, %arg1: i32, %arg2: memref<1x32x256xf32, #tpu.memory_space<vmem>>, %arg3: memref<1x256xbf16, #tpu.memory_space<vmem>>, %arg4: memref<1x256xbf16, #tpu.memory_space<vmem>>, %arg5: memref<256x768xbf16, #tpu.memory_space<vmem>>, %arg6: memref<1x768xbf16, #tpu.memory_space<vmem>>, %arg7: memref<1x2x32x128xbf16, #tpu.memory_space<vmem>>, %arg8: memref<1x2x32x128xbf16, #tpu.memory_space<vmem>>, %arg9: memref<1x2x32x128xbf16, #tpu.memory_space<vmem>>) attributes {dimension_semantics = [#tpu.dimension_semantics<parallel>, #tpu.dimension_semantics<parallel>], iteration_bounds = array<i64: 2, 2>, scalar_prefetch = 0 : i64, scratch_operands = 0 : i64, tpu.core_type = #tpu.core_type<tc>, window_params = [{transform_indices = @transform_0, window_bounds = array<i64: 1, 32, 256>}, {pipeline_mode = #tpu.pipeline_mode<synchronous>, transform_indices = @transform_1, window_bounds = array<i64: 1, 256>}, {pipeline_mode = #tpu.pipeline_mode<synchronous>, transform_indices = @transform_2, window_bounds = array<i64: 1, 256>}, {pipeline_mode = #tpu.pipeline_mode<synchronous>, transform_indices = @transform_3, window_bounds = array<i64: 256, 768>}, {pipeline_mode = #tpu.pipeline_mode<synchronous>, transform_indices = @transform_4, window_bounds = array<i64: 1, 768>}, {transform_indices = @transform_5, window_bounds = array<i64: 1, 2, 32, 128>}, {transform_indices = @transform_6, window_bounds = array<i64: 1, 2, 32, 128>}, {transform_indices = @transform_7, window_bounds = array<i64: 1, 2, 32, 128>}]} {
    %c0 = arith.constant 0 : index
    %c0_0 = arith.constant 0 : index
    %c0_1 = arith.constant 0 : index
    %0 = vector.load %arg2[%c0, %c0_0, %c0_1] : memref<1x32x256xf32, #tpu.memory_space<vmem>>, vector<1x32x256xf32>
    %1 = vector.shape_cast %0 : vector<1x32x256xf32> to vector<32x256xf32>
    %c0_2 = arith.constant 0 : index
    %c0_3 = arith.constant 0 : index
    %2 = vector.load %arg3[%c0_2, %c0_3] : memref<1x256xbf16, #tpu.memory_space<vmem>>, vector<1x256xbf16>
    %3 = arith.extf %2 : vector<1x256xbf16> to vector<1x256xf32>
    %c0_4 = arith.constant 0 : index
    %c0_5 = arith.constant 0 : index
    %4 = vector.load %arg4[%c0_4, %c0_5] : memref<1x256xbf16, #tpu.memory_space<vmem>>, vector<1x256xbf16>
    %5 = arith.extf %4 : vector<1x256xbf16> to vector<1x256xf32>
    %cst = arith.constant dense<0.000000e+00> : vector<32xf32>
    %6 = vector.multi_reduction <add>, %1, %cst [1] : vector<32x256xf32> to vector<32xf32>
    %7 = vector.shape_cast %6 : vector<32xf32> to vector<32x1xf32>
    %cst_6 = arith.constant 2.560000e+02 : f32
    %8 = vector.broadcast %cst_6 : f32 to vector<32x1xf32>
    %9 = arith.divf %7, %8 : vector<32x1xf32>
    %10 = vector.broadcast %9 : vector<32x1xf32> to vector<32x256xf32>
    %11 = arith.subf %1, %10 : vector<32x256xf32>
    %12 = arith.mulf %11, %11 : vector<32x256xf32>
    %cst_7 = arith.constant dense<0.000000e+00> : vector<32xf32>
    %13 = vector.multi_reduction <add>, %12, %cst_7 [1] : vector<32x256xf32> to vector<32xf32>
    %14 = vector.shape_cast %13 : vector<32xf32> to vector<32x1xf32>
    %cst_8 = arith.constant 2.560000e+02 : f32
    %15 = vector.broadcast %cst_8 : f32 to vector<32x1xf32>
    %16 = arith.divf %14, %15 : vector<32x1xf32>
    %17 = vector.broadcast %9 : vector<32x1xf32> to vector<32x256xf32>
    %18 = arith.subf %1, %17 : vector<32x256xf32>
    %cst_9 = arith.constant 9.99999997E-7 : f32
    %19 = vector.broadcast %cst_9 : f32 to vector<32x1xf32>
    %20 = arith.addf %16, %19 : vector<32x1xf32>
    %21 = math.rsqrt %20 : vector<32x1xf32>
    %22 = vector.broadcast %21 : vector<32x1xf32> to vector<32x256xf32>
    %23 = arith.mulf %18, %22 : vector<32x256xf32>
    %24 = vector.broadcast %3 : vector<1x256xf32> to vector<32x256xf32>
    %25 = arith.mulf %23, %24 : vector<32x256xf32>
    %26 = vector.broadcast %5 : vector<1x256xf32> to vector<32x256xf32>
    %27 = arith.addf %25, %26 : vector<32x256xf32>
    %28 = arith.truncf %27 : vector<32x256xf32> to vector<32x256xbf16>
    %c0_10 = arith.constant 0 : index
    %c0_11 = arith.constant 0 : index
    %29 = vector.load %arg5[%c0_10, %c0_11] : memref<256x768xbf16, #tpu.memory_space<vmem>>, vector<256x768xbf16>
    %cst_12 = arith.constant dense<0.000000e+00> : vector<32x768xf32>
    %30 = tpu.matmul %28, %29, %cst_12 {dimension_numbers = #tpu.dot_dimension_numbers<[1], [0], [0], [1], [0, 0, 1, 1], [], []>} : vector<32x256xbf16>, vector<256x768xbf16>, vector<32x768xf32> -> vector<32x768xf32>
    %c0_13 = arith.constant 0 : index
    %c0_14 = arith.constant 0 : index
    %31 = vector.load %arg6[%c0_13, %c0_14] : memref<1x768xbf16, #tpu.memory_space<vmem>>, vector<1x768xbf16>
    %32 = arith.extf %31 : vector<1x768xbf16> to vector<1x768xf32>
    %33 = vector.broadcast %32 : vector<1x768xf32> to vector<32x768xf32>
    %34 = arith.addf %30, %33 : vector<32x768xf32>
    %35 = vector.extract_strided_slice %34 {offsets = [0, 0], sizes = [32, 128], strides = [1, 1]} : vector<32x768xf32> to vector<32x128xf32>
    %cst_15 = arith.constant 0.0883883461 : f32
    %36 = vector.broadcast %cst_15 : f32 to vector<32x128xf32>
    %37 = arith.mulf %35, %36 : vector<32x128xf32>
    %38 = arith.truncf %37 : vector<32x128xf32> to vector<32x128xbf16>
    %c0_16 = arith.constant 0 : index
    %c0_17 = arith.constant 0 : index
    %c0_18 = arith.constant 0 : index
    %c0_19 = arith.constant 0 : index
    %39 = vector.load %arg7[%c0_16, %c0_17, %c0_18, %c0_19] : memref<1x2x32x128xbf16, #tpu.memory_space<vmem>>, vector<1x1x32x128xbf16>
    %40 = vector.shape_cast %39 : vector<1x1x32x128xbf16> to vector<32x128xbf16>
    %41 = vector.shape_cast %38 : vector<32x128xbf16> to vector<1x1x32x128xbf16>
    tpu.vector_store %arg7[%c0_16, %c0_17, %c0_18, %c0_19], %41 {strides = array<i32>} : memref<1x2x32x128xbf16, #tpu.memory_space<vmem>>, vector<1x1x32x128xbf16>,
    %42 = vector.extract_strided_slice %34 {offsets = [0, 256], sizes = [32, 128], strides = [1, 1]} : vector<32x768xf32> to vector<32x128xf32>
    %43 = arith.truncf %42 : vector<32x128xf32> to vector<32x128xbf16>
    %c0_20 = arith.constant 0 : index
    %c0_21 = arith.constant 0 : index
    %c0_22 = arith.constant 0 : index
    %c0_23 = arith.constant 0 : index
    %44 = vector.load %arg8[%c0_20, %c0_21, %c0_22, %c0_23] : memref<1x2x32x128xbf16, #tpu.memory_space<vmem>>, vector<1x1x32x128xbf16>
    %45 = vector.shape_cast %44 : vector<1x1x32x128xbf16> to vector<32x128xbf16>
    %46 = vector.shape_cast %43 : vector<32x128xbf16> to vector<1x1x32x128xbf16>
    tpu.vector_store %arg8[%c0_20, %c0_21, %c0_22, %c0_23], %46 {strides = array<i32>} : memref<1x2x32x128xbf16, #tpu.memory_space<vmem>>, vector<1x1x32x128xbf16>,
    %47 = vector.extract_strided_slice %34 {offsets = [0, 512], sizes = [32, 128], strides = [1, 1]} : vector<32x768xf32> to vector<32x128xf32>
    %48 = arith.truncf %47 : vector<32x128xf32> to vector<32x128xbf16>
    %c0_24 = arith.constant 0 : index
    %c0_25 = arith.constant 0 : index
    %c0_26 = arith.constant 0 : index
    %c0_27 = arith.constant 0 : index
    %49 = vector.load %arg9[%c0_24, %c0_25, %c0_26, %c0_27] : memref<1x2x32x128xbf16, #tpu.memory_space<vmem>>, vector<1x1x32x128xbf16>
    %50 = vector.shape_cast %49 : vector<1x1x32x128xbf16> to vector<32x128xbf16>
    %51 = vector.shape_cast %48 : vector<32x128xbf16> to vector<1x1x32x128xbf16>
    tpu.vector_store %arg9[%c0_24, %c0_25, %c0_26, %c0_27], %51 {strides = array<i32>} : memref<1x2x32x128xbf16, #tpu.memory_space<vmem>>, vector<1x1x32x128xbf16>,
    %52 = vector.extract_strided_slice %34 {offsets = [0, 128], sizes = [32, 128], strides = [1, 1]} : vector<32x768xf32> to vector<32x128xf32>
    %cst_28 = arith.constant 0.0883883461 : f32
    %53 = vector.broadcast %cst_28 : f32 to vector<32x128xf32>
    %54 = arith.mulf %52, %53 : vector<32x128xf32>
    %55 = arith.truncf %54 : vector<32x128xf32> to vector<32x128xbf16>
    %c0_29 = arith.constant 0 : index
    %c1 = arith.constant 1 : index
    %c0_30 = arith.constant 0 : index
    %c0_31 = arith.constant 0 : index
    %56 = vector.load %arg7[%c0_29, %c1, %c0_30, %c0_31] : memref<1x2x32x128xbf16, #tpu.memory_space<vmem>>, vector<1x1x32x128xbf16>
    %57 = vector.shape_cast %56 : vector<1x1x32x128xbf16> to vector<32x128xbf16>
    %58 = vector.shape_cast %55 : vector<32x128xbf16> to vector<1x1x32x128xbf16>
    tpu.vector_store %arg7[%c0_29, %c1, %c0_30, %c0_31], %58 {strides = array<i32>} : memref<1x2x32x128xbf16, #tpu.memory_space<vmem>>, vector<1x1x32x128xbf16>,
    %59 = vector.extract_strided_slice %34 {offsets = [0, 384], sizes = [32, 128], strides = [1, 1]} : vector<32x768xf32> to vector<32x128xf32>
    %60 = arith.truncf %59 : vector<32x128xf32> to vector<32x128xbf16>
    %c0_32 = arith.constant 0 : index
    %c1_33 = arith.constant 1 : index
    %c0_34 = arith.constant 0 : index
    %c0_35 = arith.constant 0 : index
    %61 = vector.load %arg8[%c0_32, %c1_33, %c0_34, %c0_35] : memref<1x2x32x128xbf16, #tpu.memory_space<vmem>>, vector<1x1x32x128xbf16>
    %62 = vector.shape_cast %61 : vector<1x1x32x128xbf16> to vector<32x128xbf16>
    %63 = vector.shape_cast %60 : vector<32x128xbf16> to vector<1x1x32x128xbf16>
    tpu.vector_store %arg8[%c0_32, %c1_33, %c0_34, %c0_35], %63 {strides = array<i32>} : memref<1x2x32x128xbf16, #tpu.memory_space<vmem>>, vector<1x1x32x128xbf16>,
    %64 = vector.extract_strided_slice %34 {offsets = [0, 640], sizes = [32, 128], strides = [1, 1]} : vector<32x768xf32> to vector<32x128xf32>
    %65 = arith.truncf %64 : vector<32x128xf32> to vector<32x128xbf16>
    %c0_36 = arith.constant 0 : index
    %c1_37 = arith.constant 1 : index
    %c0_38 = arith.constant 0 : index
    %c0_39 = arith.constant 0 : index
    %66 = vector.load %arg9[%c0_36, %c1_37, %c0_38, %c0_39] : memref<1x2x32x128xbf16, #tpu.memory_space<vmem>>, vector<1x1x32x128xbf16>
    %67 = vector.shape_cast %66 : vector<1x1x32x128xbf16> to vector<32x128xbf16>
    %68 = vector.shape_cast %65 : vector<32x128xbf16> to vector<1x1x32x128xbf16>
    tpu.vector_store %arg9[%c0_36, %c1_37, %c0_38, %c0_39], %68 {strides = array<i32>} : memref<1x2x32x128xbf16, #tpu.memory_space<vmem>>, vector<1x1x32x128xbf16>,
    return
  }
  func.func @transform_0(%arg0: i32, %arg1: i32) -> (i32, i32, i32) {
    %c0_i32 = arith.constant 0 : i32
    %c0_i32_0 = arith.constant 0 : i32
    return %arg0, %arg1, %c0_i32 : i32, i32, i32
  }
  func.func @transform_1(%arg0: i32, %arg1: i32) -> (i32, i32) {
    %c0_i32 = arith.constant 0 : i32
    %c0_i32_0 = arith.constant 0 : i32
    %c0_i32_1 = arith.constant 0 : i32
    return %c0_i32, %c0_i32_0 : i32, i32
  }
  func.func @transform_2(%arg0: i32, %arg1: i32) -> (i32, i32) {
    %c0_i32 = arith.constant 0 : i32
    %c0_i32_0 = arith.constant 0 : i32
    %c0_i32_1 = arith.constant 0 : i32
    return %c0_i32, %c0_i32_0 : i32, i32
  }
  func.func @transform_3(%arg0: i32, %arg1: i32) -> (i32, i32) {
    %c0_i32 = arith.constant 0 : i32
    %c0_i32_0 = arith.constant 0 : i32
    %c0_i32_1 = arith.constant 0 : i32
    return %c0_i32, %c0_i32_0 : i32, i32
  }
  func.func @transform_4(%arg0: i32, %arg1: i32) -> (i32, i32) {
    %c0_i32 = arith.constant 0 : i32
    %c0_i32_0 = arith.constant 0 : i32
    %c0_i32_1 = arith.constant 0 : i32
    return %c0_i32, %c0_i32_0 : i32, i32
  }
  func.func @transform_5(%arg0: i32, %arg1: i32) -> (i32, i32, i32, i32) {
    %c0_i32 = arith.constant 0 : i32
    %c0_i32_0 = arith.constant 0 : i32
    %c0_i32_1 = arith.constant 0 : i32
    return %arg0, %c0_i32, %arg1, %c0_i32_0 : i32, i32, i32, i32
  }
  func.func @transform_6(%arg0: i32, %arg1: i32) -> (i32, i32, i32, i32) {
    %c0_i32 = arith.constant 0 : i32
    %c0_i32_0 = arith.constant 0 : i32
    %c0_i32_1 = arith.constant 0 : i32
    return %arg0, %c0_i32, %arg1, %c0_i32_0 : i32, i32, i32, i32
  }
  func.func @transform_7(%arg0: i32, %arg1: i32) -> (i32, i32, i32, i32) {
    %c0_i32 = arith.constant 0 : i32
    %c0_i32_0 = arith.constant 0 : i32
    %c0_i32_1 = arith.constant 0 : i32
    return %arg0, %c0_i32, %arg1, %c0_i32_0 : i32, i32, i32, i32
  }
}

</mosaic_0001>

<llo_original>
// kernel: tpu_custom_call.1
$region0: #{tpu_custom_call.1}
  #allocation0 [shape = 'u32[]', space=smem, size = 0x4, offset = 0x4, fixed_abs, tag = 'smem constant byte address 0x4 - core index']
  #allocation1 [shape = 'u32[144,128]{1,0:T(1,128)}', space=vmem, size = 0x12000, scoped, tag = 'internal scratch']
  #allocation14 [shape = 's32[]', space=sflag, size = 0x4, offset = 0, fixed_abs, tag = 'sflag constant byte address 0x0 - dummy sync flag']
  #allocation16 [shape = 's32[]', space=sflag, size = 0x4, offset = 0, fixed_abs, tag = 'sflag constant byte address 0x0 - dummy sync flag']
  #allocation18 [shape = 's32[]', space=sflag, size = 0x4, offset = 0, fixed_abs, tag = 'sflag constant byte address 0x0 - dummy sync flag']
  %s0 = inlined_call_operand.hbm [shape: f32[2,64,256], index: 0, kind: input, shape index: {}]
  %s1 = inlined_call_operand.hbm [shape: bf16[1,256], index: 1, kind: input, shape index: {}]
  %s2 = inlined_call_operand.hbm [shape: bf16[1,256], index: 2, kind: input, shape index: {}]
  %s3 = inlined_call_operand.hbm [shape: bf16[256,768], index: 3, kind: input, shape index: {}]
  %s4 = inlined_call_operand.vmem [shape: bf16[1,768], index: 4, kind: input, shape index: {}]
  %s5 = inlined_call_operand.hbm [shape: bf16[2,2,64,128], index: 5, kind: output, shape index: {0}]
  %s6 = inlined_call_operand.hbm [shape: bf16[2,2,64,128], index: 6, kind: output, shape index: {1}]
  %s7 = inlined_call_operand.hbm [shape: bf16[2,2,64,128], index: 7, kind: output, shape index: {2}]
  %8 = xla_tuple %s5, %s6, %s7
  %s9 = sld [smem:[#allocation0]]
  $region85: #{tpu_custom_call.1} parent=0
    _
  %s11 = ssub.s32 1, %s9
  %s12 = scalar_select 0, %s11, %s9
  $region1: #{tpu_custom_call.1} parent=0
    #allocation2 [shape = 'u8[65536]{0}', space=vmem, size = 0x10000, scoped, tag = 'input window, operand 0']
    #allocation3 [shape = 's32[2]{0}', space=sflag, size = 0x8, scoped, tag = 'scoped memory for tpu_custom_call.1']
    #allocation4 [shape = 's32[2]{0}', space=sflag, size = 0x8, scoped, tag = 'scoped memory for tpu_custom_call.1']
    #allocation5 [shape = 'u8[1024]{0}', space=vmem, size = 0x400, scoped, tag = 'input window, operand 1, single buffered']
    #allocation6 [shape = 's32[1]{0}', space=sflag, size = 0x4, scoped, tag = 'scoped memory for tpu_custom_call.1']
    #allocation7 [shape = 'u8[1024]{0}', space=vmem, size = 0x400, scoped, tag = 'input window, operand 2, single buffered']
    #allocation8 [shape = 'u8[393216]{0}', space=vmem, size = 0x60000, scoped, tag = 'input window, operand 3, single buffered']
    #allocation9 [shape = 's32[1]{0}', space=sflag, size = 0x4, scoped, tag = 'scoped memory for tpu_custom_call.1']
    #allocation10 [shape = 'u8[32768]{0}', space=vmem, size = 0x8000, scoped, tag = 'output window, operand 0']
    #allocation11 [shape = 'u8[32768]{0}', space=vmem, size = 0x8000, scoped, tag = 'output window, operand 1']
    #allocation12 [shape = 's32[2]{0}', space=sflag, size = 0x8, scoped, tag = 'scoped memory for tpu_custom_call.1']
    #allocation13 [shape = 'u8[32768]{0}', space=vmem, size = 0x8000, scoped, tag = 'output window, operand 2']
    %13 = vsyncpa [#allocation3], 0
    %s14 = scalar_lea.sflag [#allocation3], 1
    %15 = vsyncpa %s14, 0
    %16 = vsyncpa [#allocation6], 0
    %17 = vsyncpa [#allocation9], 0
    %18 = vsyncpa [#allocation4], 0
    %s19 = scalar_lea.sflag [#allocation4], 1
    %20 = vsyncpa %s19, 0
    %21 = vsyncpa [#allocation12], 0
    %s22 = scalar_lea.sflag [#allocation12], 1
    %23 = vsyncpa %s22, 0
    loop: start=0, step=1, limit=6
    $region2: #{tpu_custom_call.1} parent=1 // loop_pre_header
      _
    $region3: #{tpu_custom_call.1} parent=1 // loop_header
      %s25 = sphi 0, %s29
      %p26 = scmp.ge.s32.totalorder %s25, 6
      %s32 = sphi 0, %s44
      %s33 = sphi 0, %s40
      %s34 = sphi 0, %s32
      %s35 = sphi 0, %s33
      %s36 = sphi 0, %s34
      %s37 = sphi 0, %s35
      %s49 = sphi 0, %s51
      %s52 = sphi 0, %s49
      %s53 = sphi 0, %s52
      %s69 = sphi 0, %s53
      %s73 = sphi 0, %s73
      %s75 = sphi 0, %s73
      %s76 = sphi 0, %s75
      %s90 = sphi 0, %s76
      %s94 = sphi 0, %s94
      %s96 = sphi 0, %s94
      %s97 = sphi 0, %s96
      %s111 = sphi 0, %s97
      %s115 = sphi 0, %s115
      %s117 = sphi 0, %s115
      %s118 = sphi 0, %s117
      %s132 = sphi 0, %s118
      %s136 = sphi 0, %s136
      %s138 = sphi 0, %s136
      %s139 = sphi 0, %s138
      %s153 = sphi 0, %s139
      %s161 = sphi 0, %s163
      %s164 = sphi 0, %s161
      %s165 = sphi 0, %s164
      %s181 = sphi 0, %s165
      %s189 = sphi 0, %s191
      %s192 = sphi 0, %s189
      %s193 = sphi 0, %s192
      %s209 = sphi 0, %s193
      %s217 = sphi 0, %s219
      %s220 = sphi 0, %s217
      %s221 = sphi 0, %s220
      %s237 = sphi 0, %s221
    $region4: #{tpu_custom_call.1} parent=1 // loop_header_branch
      %28 = sbr.rel (%p26) target = $region8
    $region5: #{tpu_custom_call.1} parent=1 // loop_body
      %s30 = ssub.s32 %s25, 1
      %s31 = ssub.s32 %s25, 2
      %s38 = sadd.s32 1, %s33
      %p39 = scmp.ge.s32.totalorder %s38, 2
      %s40 = scalar_select %p39, 0, %s38
      %s41 = sadd.s32 1, %s32
      %s42 = scalar_select %p39, %s41, %s32
      %p43 = scmp.ge.s32.totalorder %s42, 2
      %s44 = scalar_select %p43, 0, %s42
      %s45 = ssub.s32 %s32, %s44
      %s46 = ssub.s32 %s33, %s40
      %s47 = sor.u32 %s45, %s46
      %p48 = scmp.eq.s32.totalorder %s47, 0
      %s50 = sadd.s32 %s49, 1
      %s51 = scalar_select %p48, %s49, %s50
      %p54 = pneg %p48
      %p55 = scmp.eq.s32.totalorder %s25, 3
      %p56 = por %p54, %p55
      %p57 = scmp.ne.s32.totalorder %s49, %s52
      %p58 = scmp.eq.s32.totalorder %s25, 0
      %p59 = por %p57, %p58
      %p60 = scmp.ne.s32.totalorder %s49, %s52
      %p61 = scmp.eq.s32.totalorder %s30, 3
      %p62 = por %p60, %p61
      %p63 = scmp.ne.s32.totalorder %s52, %s53
      %p64 = scmp.eq.s32.totalorder %s30, 0
      %p65 = por %p63, %p64
      %p66 = scmp.ne.s32.totalorder %s52, %s53
      %p67 = scmp.eq.s32.totalorder %s31, 3
      %p68 = por %p66, %p67
      %p70 = scmp.ne.s32.totalorder %s53, %s69
      %p71 = scmp.eq.s32.totalorder %s31, 0
      %p72 = por %p70, %p71
      %s74 = sadd.s32 %s73, 1
      %p77 = scmp.eq.s32.totalorder %s25, 3
      %p78 = scmp.ne.s32.totalorder %s73, %s75
      %p79 = scmp.eq.s32.totalorder %s25, 0
      %p80 = por %p78, %p79
      %p81 = scmp.ne.s32.totalorder %s73, %s75
      %p82 = scmp.eq.s32.totalorder %s30, 3
      %p83 = por %p81, %p82
      %p84 = scmp.ne.s32.totalorder %s75, %s76
      %p85 = scmp.eq.s32.totalorder %s30, 0
      %p86 = por %p84, %p85
      %p87 = scmp.ne.s32.totalorder %s75, %s76
      %p88 = scmp.eq.s32.totalorder %s31, 3
      %p89 = por %p87, %p88
      %p91 = scmp.ne.s32.totalorder %s76, %s90
      %p92 = scmp.eq.s32.totalorder %s31, 0
      %p93 = por %p91, %p92
      %s95 = sadd.s32 %s94, 1
      %p98 = scmp.eq.s32.totalorder %s25, 3
      %p99 = scmp.ne.s32.totalorder %s94, %s96
      %p100 = scmp.eq.s32.totalorder %s25, 0
      %p101 = por %p99, %p100
      %p102 = scmp.ne.s32.totalorder %s94, %s96
      %p103 = scmp.eq.s32.totalorder %s30, 3
      %p104 = por %p102, %p103
      %p105 = scmp.ne.s32.totalorder %s96, %s97
      %p106 = scmp.eq.s32.totalorder %s30, 0
      %p107 = por %p105, %p106
      %p108 = scmp.ne.s32.totalorder %s96, %s97
      %p109 = scmp.eq.s32.totalorder %s31, 3
      %p110 = por %p108, %p109
      %p112 = scmp.ne.s32.totalorder %s97, %s111
      %p113 = scmp.eq.s32.totalorder %s31, 0
      %p114 = por %p112, %p113
      %s116 = sadd.s32 %s115, 1
      %p119 = scmp.eq.s32.totalorder %s25, 3
      %p120 = scmp.ne.s32.totalorder %s115, %s117
      %p121 = scmp.eq.s32.totalorder %s25, 0
      %p122 = por %p120, %p121
      %p123 = scmp.ne.s32.totalorder %s115, %s117
      %p124 = scmp.eq.s32.totalorder %s30, 3
      %p125 = por %p123, %p124
      %p126 = scmp.ne.s32.totalorder %s117, %s118
      %p127 = scmp.eq.s32.totalorder %s30, 0
      %p128 = por %p126, %p127
      %p129 = scmp.ne.s32.totalorder %s117, %s118
      %p130 = scmp.eq.s32.totalorder %s31, 3
      %p131 = por %p129, %p130
      %p133 = scmp.ne.s32.totalorder %s118, %s132
      %p134 = scmp.eq.s32.totalorder %s31, 0
      %p135 = por %p133, %p134
      %s137 = sadd.s32 %s136, 1
      %p140 = scmp.eq.s32.totalorder %s25, 3
      %p141 = scmp.ne.s32.totalorder %s136, %s138
      %p142 = scmp.eq.s32.totalorder %s25, 0
      %p143 = por %p141, %p142
      %p144 = scmp.ne.s32.totalorder %s136, %s138
      %p145 = scmp.eq.s32.totalorder %s30, 3
      %p146 = por %p144, %p145
      %p147 = scmp.ne.s32.totalorder %s138, %s139
      %p148 = scmp.eq.s32.totalorder %s30, 0
      %p149 = por %p147, %p148
      %p150 = scmp.ne.s32.totalorder %s138, %s139
      %p151 = scmp.eq.s32.totalorder %s31, 3
      %p152 = por %p150, %p151
      %p154 = scmp.ne.s32.totalorder %s139, %s153
      %p155 = scmp.eq.s32.totalorder %s31, 0
      %p156 = por %p154, %p155
      %s157 = ssub.s32 %s32, %s44
      %s158 = ssub.s32 %s33, %s40
      %s159 = sor.u32 %s157, %s158
      %p160 = scmp.eq.s32.totalorder %s159, 0
      %s162 = sadd.s32 %s161, 1
      %s163 = scalar_select %p160, %s161, %s162
      %p166 = pneg %p160
      %p167 = scmp.eq.s32.totalorder %s25, 3
      %p168 = por %p166, %p167
      %p169 = scmp.ne.s32.totalorder %s161, %s164
      %p170 = scmp.eq.s32.totalorder %s25, 0
      %p171 = por %p169, %p170
      %p172 = scmp.ne.s32.totalorder %s161, %s164
      %p173 = scmp.eq.s32.totalorder %s30, 3
      %p174 = por %p172, %p173
      %p175 = scmp.ne.s32.totalorder %s164, %s165
      %p176 = scmp.eq.s32.totalorder %s30, 0
      %p177 = por %p175, %p176
      %p178 = scmp.ne.s32.totalorder %s164, %s165
      %p179 = scmp.eq.s32.totalorder %s31, 3
      %p180 = por %p178, %p179
      %p182 = scmp.ne.s32.totalorder %s165, %s181
      %p183 = scmp.eq.s32.totalorder %s31, 0
      %p184 = por %p182, %p183
      %s185 = ssub.s32 %s32, %s44
      %s186 = ssub.s32 %s33, %s40
      %s187 = sor.u32 %s185, %s186
      %p188 = scmp.eq.s32.totalorder %s187, 0
      %s190 = sadd.s32 %s189, 1
      %s191 = scalar_select %p188, %s189, %s190
      %p194 = pneg %p188
      %p195 = scmp.eq.s32.totalorder %s25, 3
      %p196 = por %p194, %p195
      %p197 = scmp.ne.s32.totalorder %s189, %s192
      %p198 = scmp.eq.s32.totalorder %s25, 0
      %p199 = por %p197, %p198
      %p200 = scmp.ne.s32.totalorder %s189, %s192
      %p201 = scmp.eq.s32.totalorder %s30, 3
      %p202 = por %p200, %p201
      %p203 = scmp.ne.s32.totalorder %s192, %s193
      %p204 = scmp.eq.s32.totalorder %s30, 0
      %p205 = por %p203, %p204
      %p206 = scmp.ne.s32.totalorder %s192, %s193
      %p207 = scmp.eq.s32.totalorder %s31, 3
      %p208 = por %p206, %p207
      %p210 = scmp.ne.s32.totalorder %s193, %s209
      %p211 = scmp.eq.s32.totalorder %s31, 0
      %p212 = por %p210, %p211
      %s213 = ssub.s32 %s32, %s44
      %s214 = ssub.s32 %s33, %s40
      %s215 = sor.u32 %s213, %s214
      %p216 = scmp.eq.s32.totalorder %s215, 0
      %s218 = sadd.s32 %s217, 1
      %s219 = scalar_select %p216, %s217, %s218
      %p222 = pneg %p216
      %p223 = scmp.eq.s32.totalorder %s25, 3
      %p224 = por %p222, %p223
      %p225 = scmp.ne.s32.totalorder %s217, %s220
      %p226 = scmp.eq.s32.totalorder %s25, 0
      %p227 = por %p225, %p226
      %p228 = scmp.ne.s32.totalorder %s217, %s220
      %p229 = scmp.eq.s32.totalorder %s30, 3
      %p230 = por %p228, %p229
      %p231 = scmp.ne.s32.totalorder %s220, %s221
      %p232 = scmp.eq.s32.totalorder %s30, 0
      %p233 = por %p231, %p232
      %p234 = scmp.ne.s32.totalorder %s220, %s221
      %p235 = scmp.eq.s32.totalorder %s31, 3
      %p236 = por %p234, %p235
      %p238 = scmp.ne.s32.totalorder %s221, %s237
      %p239 = scmp.eq.s32.totalorder %s31, 0
      %p240 = por %p238, %p239
      %p241 = scmp.le.s32.totalorder 1, %s25
      %p242 = scmp.lt.s32.totalorder %s25, 5
      %p243 = pnand %p241, %p242
      %p244 = pneg %p243
      // Predicated region
      $region9: #{tpu_custom_call.1} parent=5 // pred_check
        _
      $region10: #{tpu_custom_call.1} parent=5 // pred_check_branch
        %246 = sbr.rel (%p243) target = $region12
      $region11: #{tpu_custom_call.1} parent=5 // pred_region
        %s247 = ssub.s32 %s25, 1
        // Predicated region
        $region13: #{tpu_custom_call.1} parent=11 // pred_check
          %p248 = pneg %p86
        $region14: #{tpu_custom_call.1} parent=11 // pred_check_branch
          %250 = sbr.rel (%p248) target = $region16
        $region15: #{tpu_custom_call.1} parent=11 // pred_region
          %s252 = ssub.s32 32, 32
          %253 = vsyncadd [#allocation6], %s252
          %s255 = sshll.u32 [#allocation5], 4
          %s256 = int_to_ptr.vmem [resolvable:$true] %s255
          %258 = dma.hbm_to_vmem [thread:$0]  %s1, 32, %s256, [#allocation6]
        $region16: #{tpu_custom_call.1} parent=11 // pred_fallthru
          _
        // Predicated region
        $region17: #{tpu_custom_call.1} parent=11 // pred_check
          %p259 = pneg %p107
        $region18: #{tpu_custom_call.1} parent=11 // pred_check_branch
          %261 = sbr.rel (%p259) target = $region20
        $region19: #{tpu_custom_call.1} parent=11 // pred_region
          %s263 = ssub.s32 32, 32
          %264 = vsyncadd [#allocation6], %s263
          %s266 = sshll.u32 [#allocation7], 4
          %s267 = int_to_ptr.vmem [resolvable:$true] %s266
          %269 = dma.hbm_to_vmem [thread:$0]  %s2, 32, %s267, [#allocation6]
        $region20: #{tpu_custom_call.1} parent=11 // pred_fallthru
          _
        // Predicated region
        $region21: #{tpu_custom_call.1} parent=11 // pred_check
          %p270 = pneg %p128
        $region22: #{tpu_custom_call.1} parent=11 // pred_check_branch
          %272 = sbr.rel (%p270) target = $region24
        $region23: #{tpu_custom_call.1} parent=11 // pred_region
          %s274 = ssub.s32 12288, 12288
          %275 = vsyncadd [#allocation9], %s274
          %s276 = sshll.u32 [#allocation8], 4
          %s277 = int_to_ptr.vmem [resolvable:$true] %s276
          %282 = dma.hbm_to_vmem [thread:$0]  %s3, 12288, %s277, [#allocation9], 384, 384, 24
        $region24: #{tpu_custom_call.1} parent=11 // pred_fallthru
          _
        // Predicated region
        $region25: #{tpu_custom_call.1} parent=11 // pred_check
          %p283 = pneg %p149
        $region26: #{tpu_custom_call.1} parent=11 // pred_check_branch
          %285 = sbr.rel (%p283) target = $region28
        $region27: #{tpu_custom_call.1} parent=11 // pred_region
          _
        $region28: #{tpu_custom_call.1} parent=11 // pred_fallthru
          _
      $region12: #{tpu_custom_call.1} parent=5 // pred_fallthru
        _
      %p286 = scmp.lt.s32.totalorder %s25, 4
      // Predicated region
      $region29: #{tpu_custom_call.1} parent=5 // pred_check
        %p287 = pneg %p286
      $region30: #{tpu_custom_call.1} parent=5 // pred_check_branch
        %289 = sbr.rel (%p287) target = $region32
      $region31: #{tpu_custom_call.1} parent=5 // pred_region
        // Predicated region
        $region33: #{tpu_custom_call.1} parent=31 // pred_check
          %p290 = pneg %p59
        $region34: #{tpu_custom_call.1} parent=31 // pred_check_branch
          %292 = sbr.rel (%p290) target = $region36
        $region35: #{tpu_custom_call.1} parent=31 // pred_region
          %s293 = sand.u32 %s49, 1
          %s294 = scalar_lea.sflag [#allocation3], %s293
          %s295 = sand.u32 %s49, 1
          %s296 = smul.addr %s295, 64
          %s297 = scalar_lea.vmem [#allocation2], %s296
          %s298 = smul.u32 4, %s33
          %s300 = ssub.s32 1024, 1024
          %301 = vsyncadd %s294, %s300
          %s302 = smul.addr %s298, 2
          %s303 = smul.addr %s32, 16
          %s304 = sadd.s32 %s302, %s303
          %s305 = smul.addr %s304, 128
          %s306 = scalar_lea.hbm %s0, %s305
          %s307 = sshll.u32 %s297, 4
          %s308 = int_to_ptr.vmem [resolvable:$true] %s307
          %313 = dma.hbm_to_vmem [thread:$0]  %s306, 1024, %s308, %s294, 256, 256, 16
        $region36: #{tpu_custom_call.1} parent=31 // pred_fallthru
          _
      $region32: #{tpu_custom_call.1} parent=5 // pred_fallthru
        _
      %p314 = scmp.le.s32.totalorder 1, %s25
      %p315 = scmp.lt.s32.totalorder %s25, 5
      %p316 = pnand %p314, %p315
      %p317 = pneg %p316
      // Predicated region
      $region37: #{tpu_custom_call.1} parent=5 // pred_check
        _
      $region38: #{tpu_custom_call.1} parent=5 // pred_check_branch
        %319 = sbr.rel (%p316) target = $region40
      $region39: #{tpu_custom_call.1} parent=5 // pred_region
        %s320 = ssub.s32 %s25, 1
        %s321 = sand.u32 %s52, 1
        %s322 = scalar_lea.sflag [#allocation3], %s321
        %s323 = sand.u32 %s52, 1
        %s324 = smul.addr %s323, 64
        %s325 = scalar_lea.vmem [#allocation2], %s324
        // Predicated region
        $region41: #{tpu_custom_call.1} parent=39 // pred_check
          %p326 = pneg %p65
        $region42: #{tpu_custom_call.1} parent=39 // pred_check_branch
          %328 = sbr.rel (%p326) target = $region44
        $region43: #{tpu_custom_call.1} parent=39 // pred_region
          %329 = dma.done %s322, 1024
        $region44: #{tpu_custom_call.1} parent=39 // pred_fallthru
          _
        // Predicated region
        $region45: #{tpu_custom_call.1} parent=39 // pred_check
          %p330 = pneg %p86
        $region46: #{tpu_custom_call.1} parent=39 // pred_check_branch
          %332 = sbr.rel (%p330) target = $region48
        $region47: #{tpu_custom_call.1} parent=39 // pred_region
          %333 = dma.done [#allocation6], 32
        $region48: #{tpu_custom_call.1} parent=39 // pred_fallthru
          _
        // Predicated region
        $region49: #{tpu_custom_call.1} parent=39 // pred_check
          %p334 = pneg %p107
        $region50: #{tpu_custom_call.1} parent=39 // pred_check_branch
          %336 = sbr.rel (%p334) target = $region52
        $region51: #{tpu_custom_call.1} parent=39 // pred_region
          %337 = dma.done [#allocation6], 32
        $region52: #{tpu_custom_call.1} parent=39 // pred_fallthru
          _
        // Predicated region
        $region53: #{tpu_custom_call.1} parent=39 // pred_check
          %p338 = pneg %p128
        $region54: #{tpu_custom_call.1} parent=39 // pred_check_branch
          %340 = sbr.rel (%p338) target = $region56
        $region55: #{tpu_custom_call.1} parent=39 // pred_region
          %341 = dma.done [#allocation9], 12288
        $region56: #{tpu_custom_call.1} parent=39 // pred_fallthru
          _
        %s342 = sand.u32 %s52, 1
        %s343 = scalar_lea.sflag [#allocation3], %s342
        %s344 = sand.u32 %s52, 1
        %s345 = smul.addr %s344, 64
        %s346 = scalar_lea.vmem [#allocation2], %s345
        %p347 = pneg %p65
        %p348 = pneg %p62
        %p349 = pneg %p86
        %p350 = pneg %p83
        %p351 = pneg %p107
        %p352 = pneg %p104
        %p353 = pneg %p128
        %p354 = pneg %p125
        %p355 = pneg %p149
        %p356 = pneg %p146
        %p357 = pneg %p177
        %p358 = pneg %p174
        %s359 = sand.u32 %s164, 1
        %s360 = scalar_lea.sflag [#allocation4], %s359
        %s361 = sand.u32 %s164, 1
        %s362 = smul.addr %s361, 32
        %s363 = scalar_lea.vmem [#allocation10], %s362
        %p364 = pneg %p205
        %p365 = pneg %p202
        %s366 = sand.u32 %s30, 1
        %s367 = scalar_lea.sflag [#allocation12], %s366
        %s368 = sand.u32 %s192, 1
        %s369 = smul.addr %s368, 32
        %s370 = scalar_lea.vmem [#allocation11], %s369
        %p371 = pneg %p233
        %p372 = pneg %p230
        %s373 = sand.u32 %s30, 1
        %s374 = scalar_lea.sflag [#allocation12], %s373
        %s375 = sand.u32 %s220, 1
        %s376 = smul.addr %s375, 32
        %s377 = scalar_lea.vmem [#allocation13], %s376
        %s378 = smul.u32 4, %s35
        %s379 = smul.u32 4, %s35
        %s380 = smul.u32 4, %s35
        %s381 = smul.u32 4, %s35
        %v382 = vld [vmem:[%s325] sm:$0xff]
        %v383 = vld [vmem:[%s325 + $0x8] sm:$0xff]
        %v384 = vld [vmem:[%s325 + $0x10] sm:$0xff]
        %v385 = vld [vmem:[%s325 + $0x18] sm:$0xff]
        %v386 = vld [vmem:[%s325 + $0x20] sm:$0xff]
        %v387 = vld [vmem:[%s325 + $0x28] sm:$0xff]
        %v388 = vld [vmem:[%s325 + $0x30] sm:$0xff]
        %v389 = vld [vmem:[%s325 + $0x38] sm:$0xff]
        %v390 = vld [vmem:[#allocation5] sm:$0x3]
        %v391 = vunpack.c.l.bf16 %v390
        %v392 = vld [vmem:[#allocation7] sm:$0x3]
        %v393 = vunpack.c.l.bf16 %v392
        %v394 = vadd.f32 %v382, %v383
        %395 = vadd.xlane.f32.xlu0 %v394
        %v396 = vpop.xlane.xlu0 %395
        %v397 = vadd.f32 %v384, %v385
        %398 = vadd.xlane.f32.xlu0 %v397
        %v399 = vpop.xlane.xlu0 %398
        %v400 = vadd.f32 %v386, %v387
        %401 = vadd.xlane.f32.xlu0 %v400
        %v402 = vpop.xlane.xlu0 %401
        %v403 = vadd.f32 %v388, %v389
        %404 = vadd.xlane.f32.xlu0 %v403
        %v405 = vpop.xlane.xlu0 %404
        %v406 = vrcp.pop 256.0
        %v407 = vmul.f32 %v396, %v406
        %v408 = vmul.f32 %v399, %v406
        %v409 = vmul.f32 %v402, %v406
        %v410 = vmul.f32 %v405, %v406
        %v411 = vsub.f32 %v382, %v407
        %v412 = vsub.f32 %v383, %v407
        %v413 = vsub.f32 %v384, %v408
        %v414 = vsub.f32 %v385, %v408
        %v415 = vsub.f32 %v386, %v409
        %v416 = vsub.f32 %v387, %v409
        %v417 = vsub.f32 %v388, %v410
        %v418 = vsub.f32 %v389, %v410
        %v419 = vmul.f32 %v411, %v411
        %v420 = vmul.f32 %v412, %v412
        %v421 = vmul.f32 %v413, %v413
        %v422 = vmul.f32 %v414, %v414
        %v423 = vmul.f32 %v415, %v415
        %v424 = vmul.f32 %v416, %v416
        %v425 = vmul.f32 %v417, %v417
        %v426 = vmul.f32 %v418, %v418
        %v427 = vadd.f32 %v419, %v420
        %428 = vadd.xlane.f32.xlu0 %v427
        %v429 = vpop.xlane.xlu0 %428
        %v430 = vadd.f32 %v421, %v422
        %431 = vadd.xlane.f32.xlu0 %v430
        %v432 = vpop.xlane.xlu0 %431
        %v433 = vadd.f32 %v423, %v424
        %434 = vadd.xlane.f32.xlu0 %v433
        %v435 = vpop.xlane.xlu0 %434
        %v436 = vadd.f32 %v425, %v426
        %437 = vadd.xlane.f32.xlu0 %v436
        %v438 = vpop.xlane.xlu0 %437
        %v439 = vmul.f32 %v429, %v406
        %v440 = vmul.f32 %v432, %v406
        %v441 = vmul.f32 %v435, %v406
        %v442 = vmul.f32 %v438, %v406
        %v443 = vadd.f32 %v439, 1e-06
        %v444 = vadd.f32 %v440, 1e-06
        %v445 = vadd.f32 %v441, 1e-06
        %v446 = vadd.f32 %v442, 1e-06
        %v447 = vrsqrt.pop %v443
        %v448 = vrsqrt.pop %v444
        %v449 = vrsqrt.pop %v445
        %v450 = vrsqrt.pop %v446
        %v451 = vmul.f32 %v411, %v447
        %v452 = vmul.f32 %v412, %v447
        %v453 = vmul.f32 %v413, %v448
        %v454 = vmul.f32 %v414, %v448
        %v455 = vmul.f32 %v415, %v449
        %v456 = vmul.f32 %v416, %v449
        %v457 = vmul.f32 %v417, %v450
        %v458 = vmul.f32 %v418, %v450
        %v460 = vlaneseq
        %v461 = vshrl.u32 %v460, 7
        %v462 = vsub.s32 0, %v461
        %v463 = vrot.slane %v391, %v462
        %v464 = vlaneseq
        %v465 = vshrl.u32 %v464, 7
        %v466 = vsub.s32 2, %v465
        %v467 = vrot.slane %v391, %v466
        %v470 = vlaneseq
        %v471 = vshrl.u32 %v470, 7
        %v472 = vsub.s32 0, %v471
        %v473 = vrot.slane %v463, %v472
        %v474 = vlaneseq
        %v475 = vshrl.u32 %v474, 7
        %v476 = vsub.s32 0, %v475
        %v477 = vrot.slane %v467, %v476
        %v478 = vmul.f32 %v451, %v473
        %v479 = vmul.f32 %v452, %v477
        %v480 = vmul.f32 %v453, %v473
        %v481 = vmul.f32 %v454, %v477
        %v482 = vmul.f32 %v455, %v473
        %v483 = vmul.f32 %v456, %v477
        %v484 = vmul.f32 %v457, %v473
        %v485 = vmul.f32 %v458, %v477
        %v487 = vlaneseq
        %v488 = vshrl.u32 %v487, 7
        %v489 = vsub.s32 0, %v488
        %v490 = vrot.slane %v393, %v489
        %v491 = vlaneseq
        %v492 = vshrl.u32 %v491, 7
        %v493 = vsub.s32 2, %v492
        %v494 = vrot.slane %v393, %v493
        %v497 = vlaneseq
        %v498 = vshrl.u32 %v497, 7
        %v499 = vsub.s32 0, %v498
        %v500 = vrot.slane %v490, %v499
        %v501 = vlaneseq
        %v502 = vshrl.u32 %v501, 7
        %v503 = vsub.s32 0, %v502
        %v504 = vrot.slane %v494, %v503
        %v505 = vadd.f32 %v478, %v500
        %v506 = vadd.f32 %v479, %v504
        %v507 = vadd.f32 %v480, %v500
        %v508 = vadd.f32 %v481, %v504
        %v509 = vadd.f32 %v482, %v500
        %v510 = vadd.f32 %v483, %v504
        %v511 = vadd.f32 %v484, %v500
        %v512 = vadd.f32 %v485, %v504
        %v513 = vpack.c.bf16 %v507, %v505
        %v514 = vpack.c.bf16 %v508, %v506
        %v515 = vpack.c.bf16 %v511, %v509
        %v516 = vpack.c.bf16 %v512, %v510
        %v517 = vld [vmem:[#allocation8] sm:$0xff]
        %v518 = vld [vmem:[#allocation8 + $0x8] sm:$0xff]
        %v519 = vld [vmem:[#allocation8 + $0x10] sm:$0xff]
        %v520 = vld [vmem:[#allocation8 + $0x18] sm:$0xff]
        %v521 = vld [vmem:[#allocation8 + $0x20] sm:$0xff]
        %v522 = vld [vmem:[#allocation8 + $0x28] sm:$0xff]
        %v523 = vld [vmem:[#allocation8 + $0x30] sm:$0xff]
        %v524 = vld [vmem:[#allocation8 + $0x38] sm:$0xff]
        %v525 = vld [vmem:[#allocation8 + $0x40] sm:$0xff]
        %v526 = vld [vmem:[#allocation8 + $0x48] sm:$0xff]
        %v527 = vld [vmem:[#allocation8 + $0x50] sm:$0xff]
        %v528 = vld [vmem:[#allocation8 + $0x58] sm:$0xff]
        %v529 = vld [vmem:[#allocation8 + $0x60] sm:$0xff]
        %v530 = vld [vmem:[#allocation8 + $0x68] sm:$0xff]
        %v531 = vld [vmem:[#allocation8 + $0x70] sm:$0xff]
        %v532 = vld [vmem:[#allocation8 + $0x78] sm:$0xff]
        %v533 = vld [vmem:[#allocation8 + $0x80] sm:$0xff]
        %v534 = vld [vmem:[#allocation8 + $0x88] sm:$0xff]
        %v535 = vld [vmem:[#allocation8 + $0x90] sm:$0xff]
        %v536 = vld [vmem:[#allocation8 + $0x98] sm:$0xff]
        %v537 = vld [vmem:[#allocation8 + $0xa0] sm:$0xff]
        %v538 = vld [vmem:[#allocation8 + $0xa8] sm:$0xff]
        %v539 = vld [vmem:[#allocation8 + $0xb0] sm:$0xff]
        %v540 = vld [vmem:[#allocation8 + $0xb8] sm:$0xff]
        %v541 = vld [vmem:[#allocation8 + $0xc0] sm:$0xff]
        %v542 = vld [vmem:[#allocation8 + $0xc8] sm:$0xff]
        %v543 = vld [vmem:[#allocation8 + $0xd0] sm:$0xff]
        %v544 = vld [vmem:[#allocation8 + $0xd8] sm:$0xff]
        %v545 = vld [vmem:[#allocation8 + $0xe0] sm:$0xff]
        %v546 = vld [vmem:[#allocation8 + $0xe8] sm:$0xff]
        %v547 = vld [vmem:[#allocation8 + $0xf0] sm:$0xff]
        %v548 = vld [vmem:[#allocation8 + $0xf8] sm:$0xff]
        %v549 = vld [vmem:[#allocation8 + $0x100] sm:$0xff]
        %v550 = vld [vmem:[#allocation8 + $0x108] sm:$0xff]
        %v551 = vld [vmem:[#allocation8 + $0x110] sm:$0xff]
        %v552 = vld [vmem:[#allocation8 + $0x118] sm:$0xff]
        %v553 = vld [vmem:[#allocation8 + $0x120] sm:$0xff]
        %v554 = vld [vmem:[#allocation8 + $0x128] sm:$0xff]
        %v555 = vld [vmem:[#allocation8 + $0x130] sm:$0xff]
        %v556 = vld [vmem:[#allocation8 + $0x138] sm:$0xff]
        %v557 = vld [vmem:[#allocation8 + $0x140] sm:$0xff]
        %v558 = vld [vmem:[#allocation8 + $0x148] sm:$0xff]
        %v559 = vld [vmem:[#allocation8 + $0x150] sm:$0xff]
        %v560 = vld [vmem:[#allocation8 + $0x158] sm:$0xff]
        %v561 = vld [vmem:[#allocation8 + $0x160] sm:$0xff]
        %v562 = vld [vmem:[#allocation8 + $0x168] sm:$0xff]
        %v563 = vld [vmem:[#allocation8 + $0x170] sm:$0xff]
        %v564 = vld [vmem:[#allocation8 + $0x178] sm:$0xff]
        %v565 = vld [vmem:[#allocation8 + $0x180] sm:$0xff]
        %v566 = vld [vmem:[#allocation8 + $0x188] sm:$0xff]
        %v567 = vld [vmem:[#allocation8 + $0x190] sm:$0xff]
        %v568 = vld [vmem:[#allocation8 + $0x198] sm:$0xff]
        %v569 = vld [vmem:[#allocation8 + $0x1a0] sm:$0xff]
        %v570 = vld [vmem:[#allocation8 + $0x1a8] sm:$0xff]
        %v571 = vld [vmem:[#allocation8 + $0x1b0] sm:$0xff]
        %v572 = vld [vmem:[#allocation8 + $0x1b8] sm:$0xff]
        %v573 = vld [vmem:[#allocation8 + $0x1c0] sm:$0xff]
        %v574 = vld [vmem:[#allocation8 + $0x1c8] sm:$0xff]
        %v575 = vld [vmem:[#allocation8 + $0x1d0] sm:$0xff]
        %v576 = vld [vmem:[#allocation8 + $0x1d8] sm:$0xff]
        %v577 = vld [vmem:[#allocation8 + $0x1e0] sm:$0xff]
        %v578 = vld [vmem:[#allocation8 + $0x1e8] sm:$0xff]
        %v579 = vld [vmem:[#allocation8 + $0x1f0] sm:$0xff]
        %v580 = vld [vmem:[#allocation8 + $0x1f8] sm:$0xff]
        %v581 = vld [vmem:[#allocation8 + $0x200] sm:$0xff]
        %v582 = vld [vmem:[#allocation8 + $0x208] sm:$0xff]
        %v583 = vld [vmem:[#allocation8 + $0x210] sm:$0xff]
        %v584 = vld [vmem:[#allocation8 + $0x218] sm:$0xff]
        %v585 = vld [vmem:[#allocation8 + $0x220] sm:$0xff]
        %v586 = vld [vmem:[#allocation8 + $0x228] sm:$0xff]
        %v587 = vld [vmem:[#allocation8 + $0x230] sm:$0xff]
        %v588 = vld [vmem:[#allocation8 + $0x238] sm:$0xff]
        %v589 = vld [vmem:[#allocation8 + $0x240] sm:$0xff]
        %v590 = vld [vmem:[#allocation8 + $0x248] sm:$0xff]
        %v591 = vld [vmem:[#allocation8 + $0x250] sm:$0xff]
        %v592 = vld [vmem:[#allocation8 + $0x258] sm:$0xff]
        %v593 = vld [vmem:[#allocation8 + $0x260] sm:$0xff]
        %v594 = vld [vmem:[#allocation8 + $0x268] sm:$0xff]
        %v595 = vld [vmem:[#allocation8 + $0x270] sm:$0xff]
        %v596 = vld [vmem:[#allocation8 + $0x278] sm:$0xff]
        %v597 = vld [vmem:[#allocation8 + $0x280] sm:$0xff]
        %v598 = vld [vmem:[#allocation8 + $0x288] sm:$0xff]
        %v599 = vld [vmem:[#allocation8 + $0x290] sm:$0xff]
        %v600 = vld [vmem:[#allocation8 + $0x298] sm:$0xff]
        %v601 = vld [vmem:[#allocation8 + $0x2a0] sm:$0xff]
        %v602 = vld [vmem:[#allocation8 + $0x2a8] sm:$0xff]
        %v603 = vld [vmem:[#allocation8 + $0x2b0] sm:$0xff]
        %v604 = vld [vmem:[#allocation8 + $0x2b8] sm:$0xff]
        %v605 = vld [vmem:[#allocation8 + $0x2c0] sm:$0xff]
        %v606 = vld [vmem:[#allocation8 + $0x2c8] sm:$0xff]
        %v607 = vld [vmem:[#allocation8 + $0x2d0] sm:$0xff]
        %v608 = vld [vmem:[#allocation8 + $0x2d8] sm:$0xff]
        %v609 = vld [vmem:[#allocation8 + $0x2e0] sm:$0xff]
        %v610 = vld [vmem:[#allocation8 + $0x2e8] sm:$0xff]
        %v611 = vld [vmem:[#allocation8 + $0x2f0] sm:$0xff]
        %v612 = vld [vmem:[#allocation8 + $0x2f8] sm:$0xff]
        %v613 = vld [vmem:[%s4] sm:$0x3f]
        %v614 = vunpack.c.l.bf16 %v613
        %v615 = vunpack.c.h.bf16 %v613
        %v618 = vlaneseq
        %v619 = vshrl.u32 %v618, 7
        %v620 = vsub.s32 0, %v619
        %v621 = vrot.slane %v614, %v620
        %v622 = vlaneseq
        %v623 = vshrl.u32 %v622, 7
        %v624 = vsub.s32 2, %v623
        %v625 = vrot.slane %v614, %v624
        %v626 = vlaneseq
        %v627 = vshrl.u32 %v626, 7
        %v628 = vsub.s32 4, %v627
        %v629 = vrot.slane %v614, %v628
        %v630 = vlaneseq
        %v631 = vshrl.u32 %v630, 7
        %v632 = vsub.s32 6, %v631
        %v633 = vrot.slane %v614, %v632
        %v634 = vlaneseq
        %v635 = vshrl.u32 %v634, 7
        %v636 = vsub.s32 0, %v635
        %v637 = vrot.slane %v615, %v636
        %v638 = vlaneseq
        %v639 = vshrl.u32 %v638, 7
        %v640 = vsub.s32 2, %v639
        %v641 = vrot.slane %v615, %v640
        %v648 = vlaneseq
        %v649 = vshrl.u32 %v648, 7
        %v650 = vsub.s32 0, %v649
        %v651 = vrot.slane %v621, %v650
        %v652 = vlaneseq
        %v653 = vshrl.u32 %v652, 7
        %v654 = vsub.s32 0, %v653
        %v655 = vrot.slane %v625, %v654
        %v656 = vlaneseq
        %v657 = vshrl.u32 %v656, 7
        %v658 = vsub.s32 0, %v657
        %v659 = vrot.slane %v629, %v658
        %v660 = vlaneseq
        %v661 = vshrl.u32 %v660, 7
        %v662 = vsub.s32 0, %v661
        %v663 = vrot.slane %v633, %v662
        %v664 = vlaneseq
        %v665 = vshrl.u32 %v664, 7
        %v666 = vsub.s32 0, %v665
        %v667 = vrot.slane %v637, %v666
        %v668 = vlaneseq
        %v669 = vshrl.u32 %v668, 7
        %v670 = vsub.s32 0, %v669
        %v671 = vrot.slane %v641, %v670
        %v768 = vunpack.c.l.b16 %v517
        %v769 = vunpack.c.h.b16 %v517
        %v770 = vunpack.c.l.b16 %v518
        %v771 = vunpack.c.h.b16 %v518
        %v772 = vunpack.c.l.b16 %v519
        %v773 = vunpack.c.h.b16 %v519
        %v774 = vunpack.c.l.b16 %v520
        %v775 = vunpack.c.h.b16 %v520
        %v776 = vunpack.c.l.b16 %v521
        %v777 = vunpack.c.h.b16 %v521
        %v778 = vunpack.c.l.b16 %v522
        %v779 = vunpack.c.h.b16 %v522
        %v780 = vunpack.c.l.b16 %v523
        %v781 = vunpack.c.h.b16 %v523
        %v782 = vunpack.c.l.b16 %v524
        %v783 = vunpack.c.h.b16 %v524
        %v784 = vunpack.c.l.b16 %v525
        %v785 = vunpack.c.h.b16 %v525
        %v786 = vunpack.c.l.b16 %v526
        %v787 = vunpack.c.h.b16 %v526
        %v788 = vunpack.c.l.b16 %v527
        %v789 = vunpack.c.h.b16 %v527
        %v790 = vunpack.c.l.b16 %v528
        %v791 = vunpack.c.h.b16 %v528
        %v792 = vunpack.c.l.b16 %v529
        %v793 = vunpack.c.h.b16 %v529
        %v794 = vunpack.c.l.b16 %v530
        %v795 = vunpack.c.h.b16 %v530
        %v796 = vunpack.c.l.b16 %v531
        %v797 = vunpack.c.h.b16 %v531
        %v798 = vunpack.c.l.b16 %v532
        %v799 = vunpack.c.h.b16 %v532
        %v800 = vunpack.c.l.b16 %v533
        %v801 = vunpack.c.h.b16 %v533
        %v802 = vunpack.c.l.b16 %v534
        %v803 = vunpack.c.h.b16 %v534
        %v804 = vunpack.c.l.b16 %v535
        %v805 = vunpack.c.h.b16 %v535
        %v806 = vunpack.c.l.b16 %v536
        %v807 = vunpack.c.h.b16 %v536
        %v808 = vunpack.c.l.b16 %v537
        %v809 = vunpack.c.h.b16 %v537
        %v810 = vunpack.c.l.b16 %v538
        %v811 = vunpack.c.h.b16 %v538
        %v812 = vunpack.c.l.b16 %v539
        %v813 = vunpack.c.h.b16 %v539
        %v814 = vunpack.c.l.b16 %v540
        %v815 = vunpack.c.h.b16 %v540
        %v816 = vunpack.c.l.b16 %v541
        %v817 = vunpack.c.h.b16 %v541
        %v818 = vunpack.c.l.b16 %v542
        %v819 = vunpack.c.h.b16 %v542
        %v820 = vunpack.c.l.b16 %v543
        %v821 = vunpack.c.h.b16 %v543
        %v822 = vunpack.c.l.b16 %v544
        %v823 = vunpack.c.h.b16 %v544
        %v824 = vunpack.c.l.b16 %v545
        %v825 = vunpack.c.h.b16 %v545
        %v826 = vunpack.c.l.b16 %v546
        %v827 = vunpack.c.h.b16 %v546
        %v828 = vunpack.c.l.b16 %v547
        %v829 = vunpack.c.h.b16 %v547
        %v830 = vunpack.c.l.b16 %v548
        %v831 = vunpack.c.h.b16 %v548
        %v832 = vunpack.c.l.b16 %v549
        %v833 = vunpack.c.h.b16 %v549
        %v834 = vunpack.c.l.b16 %v550
        %v835 = vunpack.c.h.b16 %v550
        %v836 = vunpack.c.l.b16 %v551
        %v837 = vunpack.c.h.b16 %v551
        %v838 = vunpack.c.l.b16 %v552
        %v839 = vunpack.c.h.b16 %v552
        %v840 = vunpack.c.l.b16 %v553
        %v841 = vunpack.c.h.b16 %v553
        %v842 = vunpack.c.l.b16 %v554
        %v843 = vunpack.c.h.b16 %v554
        %v844 = vunpack.c.l.b16 %v555
        %v845 = vunpack.c.h.b16 %v555
        %v846 = vunpack.c.l.b16 %v556
        %v847 = vunpack.c.h.b16 %v556
        %v848 = vunpack.c.l.b16 %v557
        %v849 = vunpack.c.h.b16 %v557
        %v850 = vunpack.c.l.b16 %v558
        %v851 = vunpack.c.h.b16 %v558
        %v852 = vunpack.c.l.b16 %v559
        %v853 = vunpack.c.h.b16 %v559
        %v854 = vunpack.c.l.b16 %v560
        %v855 = vunpack.c.h.b16 %v560
        %v856 = vunpack.c.l.b16 %v561
        %v857 = vunpack.c.h.b16 %v561
        %v858 = vunpack.c.l.b16 %v562
        %v859 = vunpack.c.h.b16 %v562
        %v860 = vunpack.c.l.b16 %v563
        %v861 = vunpack.c.h.b16 %v563
        %v862 = vunpack.c.l.b16 %v564
        %v863 = vunpack.c.h.b16 %v564
        %v864 = vunpack.c.l.b16 %v565
        %v865 = vunpack.c.h.b16 %v565
        %v866 = vunpack.c.l.b16 %v566
        %v867 = vunpack.c.h.b16 %v566
        %v868 = vunpack.c.l.b16 %v567
        %v869 = vunpack.c.h.b16 %v567
        %v870 = vunpack.c.l.b16 %v568
        %v871 = vunpack.c.h.b16 %v568
        %v872 = vunpack.c.l.b16 %v569
        %v873 = vunpack.c.h.b16 %v569
        %v874 = vunpack.c.l.b16 %v570
        %v875 = vunpack.c.h.b16 %v570
        %v876 = vunpack.c.l.b16 %v571
        %v877 = vunpack.c.h.b16 %v571
        %v878 = vunpack.c.l.b16 %v572
        %v879 = vunpack.c.h.b16 %v572
        %v880 = vunpack.c.l.b16 %v573
        %v881 = vunpack.c.h.b16 %v573
        %v882 = vunpack.c.l.b16 %v574
        %v883 = vunpack.c.h.b16 %v574
        %v884 = vunpack.c.l.b16 %v575
        %v885 = vunpack.c.h.b16 %v575
        %v886 = vunpack.c.l.b16 %v576
        %v887 = vunpack.c.h.b16 %v576
        %v888 = vunpack.c.l.b16 %v577
        %v889 = vunpack.c.h.b16 %v577
        %v890 = vunpack.c.l.b16 %v578
        %v891 = vunpack.c.h.b16 %v578
        %v892 = vunpack.c.l.b16 %v579
        %v893 = vunpack.c.h.b16 %v579
        %v894 = vunpack.c.l.b16 %v580
        %v895 = vunpack.c.h.b16 %v580
        %v896 = vunpack.c.l.b16 %v581
        %v897 = vunpack.c.h.b16 %v581
        %v898 = vunpack.c.l.b16 %v582
        %v899 = vunpack.c.h.b16 %v582
        %v900 = vunpack.c.l.b16 %v583
        %v901 = vunpack.c.h.b16 %v583
        %v902 = vunpack.c.l.b16 %v584
        %v903 = vunpack.c.h.b16 %v584
        %v904 = vunpack.c.l.b16 %v585
        %v905 = vunpack.c.h.b16 %v585
        %v906 = vunpack.c.l.b16 %v586
        %v907 = vunpack.c.h.b16 %v586
        %v908 = vunpack.c.l.b16 %v587
        %v909 = vunpack.c.h.b16 %v587
        %v910 = vunpack.c.l.b16 %v588
        %v911 = vunpack.c.h.b16 %v588
        %v912 = vunpack.c.l.b16 %v589
        %v913 = vunpack.c.h.b16 %v589
        %v914 = vunpack.c.l.b16 %v590
        %v915 = vunpack.c.h.b16 %v590
        %v916 = vunpack.c.l.b16 %v591
        %v917 = vunpack.c.h.b16 %v591
        %v918 = vunpack.c.l.b16 %v592
        %v919 = vunpack.c.h.b16 %v592
        %v920 = vunpack.c.l.b16 %v593
        %v921 = vunpack.c.h.b16 %v593
        %v922 = vunpack.c.l.b16 %v594
        %v923 = vunpack.c.h.b16 %v594
        %v924 = vunpack.c.l.b16 %v595
        %v925 = vunpack.c.h.b16 %v595
        %v926 = vunpack.c.l.b16 %v596
        %v927 = vunpack.c.h.b16 %v596
        %v928 = vunpack.c.l.b16 %v597
        %v929 = vunpack.c.h.b16 %v597
        %v930 = vunpack.c.l.b16 %v598
        %v931 = vunpack.c.h.b16 %v598
        %v932 = vunpack.c.l.b16 %v599
        %v933 = vunpack.c.h.b16 %v599
        %v934 = vunpack.c.l.b16 %v600
        %v935 = vunpack.c.h.b16 %v600
        %v936 = vunpack.c.l.b16 %v601
        %v937 = vunpack.c.h.b16 %v601
        %v938 = vunpack.c.l.b16 %v602
        %v939 = vunpack.c.h.b16 %v602
        %v940 = vunpack.c.l.b16 %v603
        %v941 = vunpack.c.h.b16 %v603
        %v942 = vunpack.c.l.b16 %v604
        %v943 = vunpack.c.h.b16 %v604
        %v944 = vunpack.c.l.b16 %v605
        %v945 = vunpack.c.h.b16 %v605
        %v946 = vunpack.c.l.b16 %v606
        %v947 = vunpack.c.h.b16 %v606
        %v948 = vunpack.c.l.b16 %v607
        %v949 = vunpack.c.h.b16 %v607
        %v950 = vunpack.c.l.b16 %v608
        %v951 = vunpack.c.h.b16 %v608
        %v952 = vunpack.c.l.b16 %v609
        %v953 = vunpack.c.h.b16 %v609
        %v954 = vunpack.c.l.b16 %v610
        %v955 = vunpack.c.h.b16 %v610
        %v956 = vunpack.c.l.b16 %v611
        %v957 = vunpack.c.h.b16 %v611
        %v958 = vunpack.c.l.b16 %v612
        %v959 = vunpack.c.h.b16 %v612
        %v960 = vpack.c.b16 %v774, %v768
        %v961 = vpack.c.b16 %v775, %v769
        %v962 = vpack.c.b16 %v776, %v770
        %v963 = vpack.c.b16 %v777, %v771
        %v964 = vpack.c.b16 %v778, %v772
        %v965 = vpack.c.b16 %v779, %v773
        %v966 = vpack.c.b16 %v786, %v780
        %v967 = vpack.c.b16 %v787, %v781
        %v968 = vpack.c.b16 %v788, %v782
        %v969 = vpack.c.b16 %v789, %v783
        %v970 = vpack.c.b16 %v790, %v784
        %v971 = vpack.c.b16 %v791, %v785
        %v972 = vpack.c.b16 %v798, %v792
        %v973 = vpack.c.b16 %v799, %v793
        %v974 = vpack.c.b16 %v800, %v794
        %v975 = vpack.c.b16 %v801, %v795
        %v976 = vpack.c.b16 %v802, %v796
        %v977 = vpack.c.b16 %v803, %v797
        %v978 = vpack.c.b16 %v810, %v804
        %v979 = vpack.c.b16 %v811, %v805
        %v980 = vpack.c.b16 %v812, %v806
        %v981 = vpack.c.b16 %v813, %v807
        %v982 = vpack.c.b16 %v814, %v808
        %v983 = vpack.c.b16 %v815, %v809
        %v984 = vpack.c.b16 %v822, %v816
        %v985 = vpack.c.b16 %v823, %v817
        %v986 = vpack.c.b16 %v824, %v818
        %v987 = vpack.c.b16 %v825, %v819
        %v988 = vpack.c.b16 %v826, %v820
        %v989 = vpack.c.b16 %v827, %v821
        %v990 = vpack.c.b16 %v834, %v828
        %v991 = vpack.c.b16 %v835, %v829
        %v992 = vpack.c.b16 %v836, %v830
        %v993 = vpack.c.b16 %v837, %v831
        %v994 = vpack.c.b16 %v838, %v832
        %v995 = vpack.c.b16 %v839, %v833
        %v996 = vpack.c.b16 %v846, %v840
        %v997 = vpack.c.b16 %v847, %v841
        %v998 = vpack.c.b16 %v848, %v842
        %v999 = vpack.c.b16 %v849, %v843
        %v1000 = vpack.c.b16 %v850, %v844
        %v1001 = vpack.c.b16 %v851, %v845
        %v1002 = vpack.c.b16 %v858, %v852
        %v1003 = vpack.c.b16 %v859, %v853
        %v1004 = vpack.c.b16 %v860, %v854
        %v1005 = vpack.c.b16 %v861, %v855
        %v1006 = vpack.c.b16 %v862, %v856
        %v1007 = vpack.c.b16 %v863, %v857
        %v1008 = vpack.c.b16 %v870, %v864
        %v1009 = vpack.c.b16 %v871, %v865
        %v1010 = vpack.c.b16 %v872, %v866
        %v1011 = vpack.c.b16 %v873, %v867
        %v1012 = vpack.c.b16 %v874, %v868
        %v1013 = vpack.c.b16 %v875, %v869
        %v1014 = vpack.c.b16 %v882, %v876
        %v1015 = vpack.c.b16 %v883, %v877
        %v1016 = vpack.c.b16 %v884, %v878
        %v1017 = vpack.c.b16 %v885, %v879
        %v1018 = vpack.c.b16 %v886, %v880
        %v1019 = vpack.c.b16 %v887, %v881
        %v1020 = vpack.c.b16 %v894, %v888
        %v1021 = vpack.c.b16 %v895, %v889
        %v1022 = vpack.c.b16 %v896, %v890
        %v1023 = vpack.c.b16 %v897, %v891
        %v1024 = vpack.c.b16 %v898, %v892
        %v1025 = vpack.c.b16 %v899, %v893
        %v1026 = vpack.c.b16 %v906, %v900
        %v1027 = vpack.c.b16 %v907, %v901
        %v1028 = vpack.c.b16 %v908, %v902
        %v1029 = vpack.c.b16 %v909, %v903
        %v1030 = vpack.c.b16 %v910, %v904
        %v1031 = vpack.c.b16 %v911, %v905
        %v1032 = vpack.c.b16 %v918, %v912
        %v1033 = vpack.c.b16 %v919, %v913
        %v1034 = vpack.c.b16 %v920, %v914
        %v1035 = vpack.c.b16 %v921, %v915
        %v1036 = vpack.c.b16 %v922, %v916
        %v1037 = vpack.c.b16 %v923, %v917
        %v1038 = vpack.c.b16 %v930, %v924
        %v1039 = vpack.c.b16 %v931, %v925
        %v1040 = vpack.c.b16 %v932, %v926
        %v1041 = vpack.c.b16 %v933, %v927
        %v1042 = vpack.c.b16 %v934, %v928
        %v1043 = vpack.c.b16 %v935, %v929
        %v1044 = vpack.c.b16 %v942, %v936
        %v1045 = vpack.c.b16 %v943, %v937
        %v1046 = vpack.c.b16 %v944, %v938
        %v1047 = vpack.c.b16 %v945, %v939
        %v1048 = vpack.c.b16 %v946, %v940
        %v1049 = vpack.c.b16 %v947, %v941
        %v1050 = vpack.c.b16 %v954, %v948
        %v1051 = vpack.c.b16 %v955, %v949
        %v1052 = vpack.c.b16 %v956, %v950
        %v1053 = vpack.c.b16 %v957, %v951
        %v1054 = vpack.c.b16 %v958, %v952
        %v1055 = vpack.c.b16 %v959, %v953
        %1152 = vmatprep.subr.bf16.mxu0 %v1003
        %1153 = vmatpush1.bf16.msra.mxu0 %v1002
        %1154 = vmatprep.subr.bf16.mxu0 %v997
        %1155 = vmatpush1.bf16.msra.mxu0 %v996
        %1156 = vmatprep.subr.bf16.mxu0 %v991
        %1157 = vmatpush1.bf16.msra.mxu0 %v990
        %1158 = vmatprep.subr.bf16.mxu0 %v985
        %1159 = vmatpush1.bf16.msra.mxu0 %v984
        %1160 = vmatprep.subr.bf16.mxu0 %v979
        %1161 = vmatpush1.bf16.msra.mxu0 %v978
        %1162 = vmatprep.subr.bf16.mxu0 %v973
        %1163 = vmatpush1.bf16.msra.mxu0 %v972
        %1164 = vmatprep.subr.bf16.mxu0 %v967
        %1165 = vmatpush1.bf16.msra.mxu0 %v966
        %1166 = vmatprep.subr.bf16.mxu0 %v961
        %1167 = vmatpush1.bf16.msra.mxu0 %v960
        %1168 = vmatprep.subr.bf16.mxu0 %v1051
        %1169 = vmatpush2.bf16.msra.mxu0 %v1050
        %1170 = vmatprep.subr.bf16.mxu0 %v1045
        %1171 = vmatpush2.bf16.msra.mxu0 %v1044
        %1172 = vmatprep.subr.bf16.mxu0 %v1039
        %1173 = vmatpush2.bf16.msra.mxu0 %v1038
        %1174 = vmatprep.subr.bf16.mxu0 %v1033
        %1175 = vmatpush2.bf16.msra.mxu0 %v1032
        %1176 = vmatprep.subr.bf16.mxu0 %v1027
        %1177 = vmatpush2.bf16.msra.mxu0 %v1026
        %1178 = vmatprep.subr.bf16.mxu0 %v1021
        %1179 = vmatpush2.bf16.msra.mxu0 %v1020
        %1180 = vmatprep.subr.bf16.mxu0 %v1015
        %1181 = vmatpush2.bf16.msra.mxu0 %v1014
        %1182 = vmatprep.subr.bf16.mxu0 %v1009
        %1183 = vmatpush2.bf16.msra.mxu0 %v1008
        %1184 = vmatprep.mubr.bf16.mxu0 %v514
        %1185 = vmatmul.mubr.bf16.gmra.mxu0 %v513
        %v1186 = vpop.f32.mrf.mxu0
        %v1187 = vadd.f32 %v651, %v1186
        %v1188 = vpop.f32.mrf.mxu0
        %v1189 = vadd.f32 %v655, %v1188
        %v1190 = vpop.f32.mrf.mxu0
        %v1191 = vadd.f32 %v651, %v1190
        %v1192 = vpop.f32.mrf.mxu0
        %v1193 = vadd.f32 %v655, %v1192
        %1194 = vmatprep.mubr.bf16.mxu0 %v516
        %1195 = vmatmul.mubr.bf16.gmra.mxu0 %v515
        %v1196 = vpop.f32.mrf.mxu0
        %v1197 = vadd.f32 %v651, %v1196
        %v1198 = vpop.f32.mrf.mxu0
        %v1199 = vadd.f32 %v655, %v1198
        %v1200 = vpop.f32.mrf.mxu0
        %v1201 = vadd.f32 %v651, %v1200
        %v1202 = vpop.f32.mrf.mxu0
        %v1203 = vadd.f32 %v655, %v1202
        %1204 = vdwg.mxu0
        %1205 = vmatprep.subr.bf16.mxu0 %v1005
        %1206 = vmatpush1.bf16.msra.mxu0 %v1004
        %1207 = vmatprep.subr.bf16.mxu0 %v999
        %1208 = vmatpush1.bf16.msra.mxu0 %v998
        %1209 = vmatprep.subr.bf16.mxu0 %v993
        %1210 = vmatpush1.bf16.msra.mxu0 %v992
        %1211 = vmatprep.subr.bf16.mxu0 %v987
        %1212 = vmatpush1.bf16.msra.mxu0 %v986
        %1213 = vmatprep.subr.bf16.mxu0 %v981
        %1214 = vmatpush1.bf16.msra.mxu0 %v980
        %1215 = vmatprep.subr.bf16.mxu0 %v975
        %1216 = vmatpush1.bf16.msra.mxu0 %v974
        %1217 = vmatprep.subr.bf16.mxu0 %v969
        %1218 = vmatpush1.bf16.msra.mxu0 %v968
        %1219 = vmatprep.subr.bf16.mxu0 %v963
        %1220 = vmatpush1.bf16.msra.mxu0 %v962
        %1221 = vmatprep.subr.bf16.mxu0 %v1053
        %1222 = vmatpush2.bf16.msra.mxu0 %v1052
        %1223 = vmatprep.subr.bf16.mxu0 %v1047
        %1224 = vmatpush2.bf16.msra.mxu0 %v1046
        %1225 = vmatprep.subr.bf16.mxu0 %v1041
        %1226 = vmatpush2.bf16.msra.mxu0 %v1040
        %1227 = vmatprep.subr.bf16.mxu0 %v1035
        %1228 = vmatpush2.bf16.msra.mxu0 %v1034
        %1229 = vmatprep.subr.bf16.mxu0 %v1029
        %1230 = vmatpush2.bf16.msra.mxu0 %v1028
        %1231 = vmatprep.subr.bf16.mxu0 %v1023
        %1232 = vmatpush2.bf16.msra.mxu0 %v1022
        %1233 = vmatprep.subr.bf16.mxu0 %v1017
        %1234 = vmatpush2.bf16.msra.mxu0 %v1016
        %1235 = vmatprep.subr.bf16.mxu0 %v1011
        %1236 = vmatpush2.bf16.msra.mxu0 %v1010
        %1237 = vmatprep.mubr.bf16.mxu0 %v514
        %1238 = vmatmul.mubr.bf16.gmra.mxu0 %v513
        %v1239 = vpop.f32.mrf.mxu0
        %v1240 = vadd.f32 %v659, %v1239
        %v1241 = vpop.f32.mrf.mxu0
        %v1242 = vadd.f32 %v663, %v1241
        %v1243 = vpop.f32.mrf.mxu0
        %v1244 = vadd.f32 %v659, %v1243
        %v1245 = vpop.f32.mrf.mxu0
        %v1246 = vadd.f32 %v663, %v1245
        %1247 = vmatprep.mubr.bf16.mxu0 %v516
        %1248 = vmatmul.mubr.bf16.gmra.mxu0 %v515
        %v1249 = vpop.f32.mrf.mxu0
        %v1250 = vadd.f32 %v659, %v1249
        %v1251 = vpop.f32.mrf.mxu0
        %v1252 = vadd.f32 %v663, %v1251
        %v1253 = vpop.f32.mrf.mxu0
        %v1254 = vadd.f32 %v659, %v1253
        %v1255 = vpop.f32.mrf.mxu0
        %v1256 = vadd.f32 %v663, %v1255
        %1257 = vdwg.mxu0
        %1258 = vmatprep.subr.bf16.mxu0 %v1007
        %1259 = vmatpush1.bf16.msra.mxu0 %v1006
        %1260 = vmatprep.subr.bf16.mxu0 %v1001
        %1261 = vmatpush1.bf16.msra.mxu0 %v1000
        %1262 = vmatprep.subr.bf16.mxu0 %v995
        %1263 = vmatpush1.bf16.msra.mxu0 %v994
        %1264 = vmatprep.subr.bf16.mxu0 %v989
        %1265 = vmatpush1.bf16.msra.mxu0 %v988
        %1266 = vmatprep.subr.bf16.mxu0 %v983
        %1267 = vmatpush1.bf16.msra.mxu0 %v982
        %1268 = vmatprep.subr.bf16.mxu0 %v977
        %1269 = vmatpush1.bf16.msra.mxu0 %v976
        %1270 = vmatprep.subr.bf16.mxu0 %v971
        %1271 = vmatpush1.bf16.msra.mxu0 %v970
        %1272 = vmatprep.subr.bf16.mxu0 %v965
        %1273 = vmatpush1.bf16.msra.mxu0 %v964
        %1274 = vmatprep.subr.bf16.mxu0 %v1055
        %1275 = vmatpush2.bf16.msra.mxu0 %v1054
        %1276 = vmatprep.subr.bf16.mxu0 %v1049
        %1277 = vmatpush2.bf16.msra.mxu0 %v1048
        %1278 = vmatprep.subr.bf16.mxu0 %v1043
        %1279 = vmatpush2.bf16.msra.mxu0 %v1042
        %1280 = vmatprep.subr.bf16.mxu0 %v1037
        %1281 = vmatpush2.bf16.msra.mxu0 %v1036
        %1282 = vmatprep.subr.bf16.mxu0 %v1031
        %1283 = vmatpush2.bf16.msra.mxu0 %v1030
        %1284 = vmatprep.subr.bf16.mxu0 %v1025
        %1285 = vmatpush2.bf16.msra.mxu0 %v1024
        %1286 = vmatprep.subr.bf16.mxu0 %v1019
        %1287 = vmatpush2.bf16.msra.mxu0 %v1018
        %1288 = vmatprep.subr.bf16.mxu0 %v1013
        %1289 = vmatpush2.bf16.msra.mxu0 %v1012
        %1290 = vmatprep.mubr.bf16.mxu0 %v514
        %1291 = vmatmul.mubr.bf16.gmra.mxu0 %v513
        %v1292 = vpop.f32.mrf.mxu0
        %v1293 = vadd.f32 %v667, %v1292
        %v1294 = vpop.f32.mrf.mxu0
        %v1295 = vadd.f32 %v671, %v1294
        %v1296 = vpop.f32.mrf.mxu0
        %v1297 = vadd.f32 %v667, %v1296
        %v1298 = vpop.f32.mrf.mxu0
        %v1299 = vadd.f32 %v671, %v1298
        %1300 = vmatprep.mubr.bf16.mxu0 %v516
        %1301 = vmatmul.mubr.bf16.gmra.mxu0 %v515
        %v1302 = vpop.f32.mrf.mxu0
        %v1303 = vadd.f32 %v667, %v1302
        %v1304 = vpop.f32.mrf.mxu0
        %v1305 = vadd.f32 %v671, %v1304
        %v1306 = vpop.f32.mrf.mxu0
        %v1307 = vadd.f32 %v667, %v1306
        %v1308 = vpop.f32.mrf.mxu0
        %v1309 = vadd.f32 %v671, %v1308
        %1310 = vdwg.mxu0
        %v1311 = vmul.f32 %v1187, 0.088388346
        %v1312 = vmul.f32 %v1191, 0.088388346
        %v1313 = vmul.f32 %v1197, 0.088388346
        %v1314 = vmul.f32 %v1201, 0.088388346
        %v1315 = vpack.c.bf16 %v1312, %v1311
        %v1316 = vpack.c.bf16 %v1314, %v1313
        %v1319 = vunpack.c.l.b16 %v1315
        %v1320 = vunpack.c.h.b16 %v1315
        %v1321 = vunpack.c.l.b16 %v1316
        %v1322 = vunpack.c.h.b16 %v1316
        %v1323 = vpack.c.b16 %v1319, %v1319
        %v1324 = vpack.c.b16 %v1320, %v1320
        %v1325 = vpack.c.b16 %v1321, %v1321
        %v1326 = vpack.c.b16 %v1322, %v1322
        %1331 = vst [vmem:[%s363] sm:$0xf] %v1323
        %1332 = vst [vmem:[%s363 + $0x4] sm:$0xf] %v1324
        %1333 = vst [vmem:[%s363 + $0x8] sm:$0xf] %v1325
        %1334 = vst [vmem:[%s363 + $0xc] sm:$0xf] %v1326
        %v1335 = vpack.c.bf16 %v1244, %v1240
        %v1336 = vpack.c.bf16 %v1254, %v1250
        %v1339 = vunpack.c.l.b16 %v1335
        %v1340 = vunpack.c.h.b16 %v1335
        %v1341 = vunpack.c.l.b16 %v1336
        %v1342 = vunpack.c.h.b16 %v1336
        %v1343 = vpack.c.b16 %v1339, %v1339
        %v1344 = vpack.c.b16 %v1340, %v1340
        %v1345 = vpack.c.b16 %v1341, %v1341
        %v1346 = vpack.c.b16 %v1342, %v1342
        %1351 = vst [vmem:[%s370] sm:$0xf] %v1343
        %1352 = vst [vmem:[%s370 + $0x4] sm:$0xf] %v1344
        %1353 = vst [vmem:[%s370 + $0x8] sm:$0xf] %v1345
        %1354 = vst [vmem:[%s370 + $0xc] sm:$0xf] %v1346
        %v1355 = vpack.c.bf16 %v1297, %v1293
        %v1356 = vpack.c.bf16 %v1307, %v1303
        %v1359 = vunpack.c.l.b16 %v1355
        %v1360 = vunpack.c.h.b16 %v1355
        %v1361 = vunpack.c.l.b16 %v1356
        %v1362 = vunpack.c.h.b16 %v1356
        %v1363 = vpack.c.b16 %v1359, %v1359
        %v1364 = vpack.c.b16 %v1360, %v1360
        %v1365 = vpack.c.b16 %v1361, %v1361
        %v1366 = vpack.c.b16 %v1362, %v1362
        %1371 = vst [vmem:[%s377] sm:$0xf] %v1363
        %1372 = vst [vmem:[%s377 + $0x4] sm:$0xf] %v1364
        %1373 = vst [vmem:[%s377 + $0x8] sm:$0xf] %v1365
        %1374 = vst [vmem:[%s377 + $0xc] sm:$0xf] %v1366
        %v1375 = vmul.f32 %v1189, 0.088388346
        %v1376 = vmul.f32 %v1193, 0.088388346
        %v1377 = vmul.f32 %v1199, 0.088388346
        %v1378 = vmul.f32 %v1203, 0.088388346
        %v1379 = vpack.c.bf16 %v1376, %v1375
        %v1380 = vpack.c.bf16 %v1378, %v1377
        %v1383 = vunpack.c.l.b16 %v1379
        %v1384 = vunpack.c.h.b16 %v1379
        %v1385 = vunpack.c.l.b16 %v1380
        %v1386 = vunpack.c.h.b16 %v1380
        %v1387 = vpack.c.b16 %v1383, %v1383
        %v1388 = vpack.c.b16 %v1384, %v1384
        %v1389 = vpack.c.b16 %v1385, %v1385
        %v1390 = vpack.c.b16 %v1386, %v1386
        %s1395 = scalar_lea.vmem %s363, 16 [#allocation10]
        %1396 = vst [vmem:[%s1395] sm:$0xf] %v1387
        %1397 = vst [vmem:[%s1395 + $0x4] sm:$0xf] %v1388
        %1398 = vst [vmem:[%s1395 + $0x8] sm:$0xf] %v1389
        %1399 = vst [vmem:[%s1395 + $0xc] sm:$0xf] %v1390
        %v1400 = vpack.c.bf16 %v1246, %v1242
        %v1401 = vpack.c.bf16 %v1256, %v1252
        %v1404 = vunpack.c.l.b16 %v1400
        %v1405 = vunpack.c.h.b16 %v1400
        %v1406 = vunpack.c.l.b16 %v1401
        %v1407 = vunpack.c.h.b16 %v1401
        %v1408 = vpack.c.b16 %v1404, %v1404
        %v1409 = vpack.c.b16 %v1405, %v1405
        %v1410 = vpack.c.b16 %v1406, %v1406
        %v1411 = vpack.c.b16 %v1407, %v1407
        %s1416 = scalar_lea.vmem %s370, 16 [#allocation11]
        %1417 = vst [vmem:[%s1416] sm:$0xf] %v1408
        %1418 = vst [vmem:[%s1416 + $0x4] sm:$0xf] %v1409
        %1419 = vst [vmem:[%s1416 + $0x8] sm:$0xf] %v1410
        %1420 = vst [vmem:[%s1416 + $0xc] sm:$0xf] %v1411
        %v1421 = vpack.c.bf16 %v1299, %v1295
        %v1422 = vpack.c.bf16 %v1309, %v1305
        %v1425 = vunpack.c.l.b16 %v1421
        %v1426 = vunpack.c.h.b16 %v1421
        %v1427 = vunpack.c.l.b16 %v1422
        %v1428 = vunpack.c.h.b16 %v1422
        %v1429 = vpack.c.b16 %v1425, %v1425
        %v1430 = vpack.c.b16 %v1426, %v1426
        %v1431 = vpack.c.b16 %v1427, %v1427
        %v1432 = vpack.c.b16 %v1428, %v1428
        %s1437 = scalar_lea.vmem %s377, 16 [#allocation13]
        %1438 = vst [vmem:[%s1437] sm:$0xf] %v1429
        %1439 = vst [vmem:[%s1437 + $0x4] sm:$0xf] %v1430
        %1440 = vst [vmem:[%s1437 + $0x8] sm:$0xf] %v1431
        %1441 = vst [vmem:[%s1437 + $0xc] sm:$0xf] %v1432
        %s1442 = sand.u32 %s164, 1
        %s1443 = scalar_lea.sflag [#allocation4], %s1442
        %s1444 = sand.u32 %s164, 1
        %s1445 = smul.addr %s1444, 32
        %s1446 = scalar_lea.vmem [#allocation10], %s1445
        %s1447 = sand.u32 %s30, 1
        %s1448 = scalar_lea.sflag [#allocation12], %s1447
        %s1449 = sand.u32 %s192, 1
        %s1450 = smul.addr %s1449, 32
        %s1451 = scalar_lea.vmem [#allocation11], %s1450
        %s1452 = sand.u32 %s30, 1
        %s1453 = scalar_lea.sflag [#allocation12], %s1452
        %s1454 = sand.u32 %s220, 1
        %s1455 = smul.addr %s1454, 32
        %s1456 = scalar_lea.vmem [#allocation13], %s1455
        // Predicated region
        $region57: #{tpu_custom_call.1} parent=39 // pred_check
          %p1457 = pneg %p174
        $region58: #{tpu_custom_call.1} parent=39 // pred_check_branch
          %1459 = sbr.rel (%p1457) target = $region60
        $region59: #{tpu_custom_call.1} parent=39 // pred_region
          #allocation15 [shape = 'u32[6]{0}', space=smem, size = 0x18, scoped, tag = 'DMA stride descriptor']
          %s1460 = smul.u32 4, %s35
          %s1462 = ssub.s32 512, 512
          %1463 = vsyncadd %s1443, %s1462
          %s1464 = smul.addr %s34, 16
          %s1465 = sadd.s32 %s1460, %s1464
          %s1466 = smul.addr %s1465, 64
          %s1467 = scalar_lea.hbm %s5, %s1466
          %s1469 = sshll.u32 1, 14
          %s1470 = sxor.u32 4294967295, %s1469
          %s1473 = sshll.u32 7, 18
          %s1474 = sxor.u32 4294967295, %s1473
          %s1475 = sand.u32 0, %s1474
          %s1477 = sor.u32 %s1475, 0
          %s1478 = sshll.u32 %s1446, 4
          %s1479 = int_to_ptr.vmem [resolvable:$true] %s1478
          %1485 = sst [smem:[#allocation15]] 256
          %s1486 = scalar_lea.smem [#allocation15], 1
          %1487 = sst [smem:[%s1486]] 512
          %s1488 = scalar_lea.smem [#allocation15], 2
          %1489 = sst [smem:[%s1488]] 4
          %s1490 = scalar_lea.smem [#allocation15], 3
          %1491 = sst [smem:[%s1490]] 64
          %s1492 = scalar_lea.smem [#allocation15], 4
          %1493 = sst [smem:[%s1492]] 64
          %s1494 = scalar_lea.smem [#allocation15], 5
          %1495 = sst [smem:[%s1494]] 4
          %1497 = dma.general %s1479, 512, %s1467, %s1443, 131072, [#allocation15], %s1477, 0
        $region60: #{tpu_custom_call.1} parent=39 // pred_fallthru
          _
        // Predicated region
        $region61: #{tpu_custom_call.1} parent=39 // pred_check
          %p1498 = pneg %p202
        $region62: #{tpu_custom_call.1} parent=39 // pred_check_branch
          %1500 = sbr.rel (%p1498) target = $region64
        $region63: #{tpu_custom_call.1} parent=39 // pred_region
          #allocation17 [shape = 'u32[6]{0}', space=smem, size = 0x18, scoped, tag = 'DMA stride descriptor']
          %s1501 = smul.u32 4, %s35
          %s1503 = ssub.s32 512, 512
          %1504 = vsyncadd %s1448, %s1503
          %s1505 = smul.addr %s34, 16
          %s1506 = sadd.s32 %s1501, %s1505
          %s1507 = smul.addr %s1506, 64
          %s1508 = scalar_lea.hbm %s6, %s1507
          %s1510 = sshll.u32 1, 14
          %s1511 = sxor.u32 4294967295, %s1510
          %s1514 = sshll.u32 7, 18
          %s1515 = sxor.u32 4294967295, %s1514
          %s1516 = sand.u32 0, %s1515
          %s1518 = sor.u32 %s1516, 0
          %s1519 = sshll.u32 %s1451, 4
          %s1520 = int_to_ptr.vmem [resolvable:$true] %s1519
          %1526 = sst [smem:[#allocation17]] 256
          %s1527 = scalar_lea.smem [#allocation17], 1
          %1528 = sst [smem:[%s1527]] 512
          %s1529 = scalar_lea.smem [#allocation17], 2
          %1530 = sst [smem:[%s1529]] 4
          %s1531 = scalar_lea.smem [#allocation17], 3
          %1532 = sst [smem:[%s1531]] 64
          %s1533 = scalar_lea.smem [#allocation17], 4
          %1534 = sst [smem:[%s1533]] 64
          %s1535 = scalar_lea.smem [#allocation17], 5
          %1536 = sst [smem:[%s1535]] 4
          %1538 = dma.general %s1520, 512, %s1508, %s1448, 131072, [#allocation17], %s1518, 0
        $region64: #{tpu_custom_call.1} parent=39 // pred_fallthru
          _
        // Predicated region
        $region65: #{tpu_custom_call.1} parent=39 // pred_check
          %p1539 = pneg %p230
        $region66: #{tpu_custom_call.1} parent=39 // pred_check_branch
          %1541 = sbr.rel (%p1539) target = $region68
        $region67: #{tpu_custom_call.1} parent=39 // pred_region
          #allocation19 [shape = 'u32[6]{0}', space=smem, size = 0x18, scoped, tag = 'DMA stride descriptor']
          %s1542 = smul.u32 4, %s35
          %s1544 = ssub.s32 512, 512
          %1545 = vsyncadd %s1453, %s1544
          %s1546 = smul.addr %s34, 16
          %s1547 = sadd.s32 %s1542, %s1546
          %s1548 = smul.addr %s1547, 64
          %s1549 = scalar_lea.hbm %s7, %s1548
          %s1551 = sshll.u32 1, 14
          %s1552 = sxor.u32 4294967295, %s1551
          %s1555 = sshll.u32 7, 18
          %s1556 = sxor.u32 4294967295, %s1555
          %s1557 = sand.u32 0, %s1556
          %s1559 = sor.u32 %s1557, 0
          %s1560 = sshll.u32 %s1456, 4
          %s1561 = int_to_ptr.vmem [resolvable:$true] %s1560
          %1567 = sst [smem:[#allocation19]] 256
          %s1568 = scalar_lea.smem [#allocation19], 1
          %1569 = sst [smem:[%s1568]] 512
          %s1570 = scalar_lea.smem [#allocation19], 2
          %1571 = sst [smem:[%s1570]] 4
          %s1572 = scalar_lea.smem [#allocation19], 3
          %1573 = sst [smem:[%s1572]] 64
          %s1574 = scalar_lea.smem [#allocation19], 4
          %1575 = sst [smem:[%s1574]] 64
          %s1576 = scalar_lea.smem [#allocation19], 5
          %1577 = sst [smem:[%s1576]] 4
          %1579 = dma.general %s1561, 512, %s1549, %s1453, 131072, [#allocation19], %s1559, 0
        $region68: #{tpu_custom_call.1} parent=39 // pred_fallthru
          _
      $region40: #{tpu_custom_call.1} parent=5 // pred_fallthru
        _
      %p1580 = scmp.le.s32.totalorder 2, %s25
      // Predicated region
      $region69: #{tpu_custom_call.1} parent=5 // pred_check
        %p1581 = pneg %p1580
      $region70: #{tpu_custom_call.1} parent=5 // pred_check_branch
        %1583 = sbr.rel (%p1581) target = $region72
      $region71: #{tpu_custom_call.1} parent=5 // pred_region
        %s1584 = ssub.s32 %s25, 2
        // Predicated region
        $region73: #{tpu_custom_call.1} parent=71 // pred_check
          %p1585 = pneg %p180
        $region74: #{tpu_custom_call.1} parent=71 // pred_check_branch
          %1587 = sbr.rel (%p1585) target = $region76
        $region75: #{tpu_custom_call.1} parent=71 // pred_region
          %s1588 = sand.u32 %s165, 1
          %s1589 = scalar_lea.sflag [#allocation4], %s1588
          %s1590 = sand.u32 %s165, 1
          %s1591 = smul.addr %s1590, 32
          %s1592 = scalar_lea.vmem [#allocation10], %s1591
          %1593 = dma.done %s1589, 512
        $region76: #{tpu_custom_call.1} parent=71 // pred_fallthru
          _
        // Predicated region
        $region77: #{tpu_custom_call.1} parent=71 // pred_check
          %p1594 = pneg %p208
        $region78: #{tpu_custom_call.1} parent=71 // pred_check_branch
          %1596 = sbr.rel (%p1594) target = $region80
        $region79: #{tpu_custom_call.1} parent=71 // pred_region
          %s1597 = sand.u32 %s31, 1
          %s1598 = scalar_lea.sflag [#allocation12], %s1597
          %s1599 = sand.u32 %s193, 1
          %s1600 = smul.addr %s1599, 32
          %s1601 = scalar_lea.vmem [#allocation11], %s1600
          %1602 = dma.done %s1598, 512
        $region80: #{tpu_custom_call.1} parent=71 // pred_fallthru
          _
        // Predicated region
        $region81: #{tpu_custom_call.1} parent=71 // pred_check
          %p1603 = pneg %p236
        $region82: #{tpu_custom_call.1} parent=71 // pred_check_branch
          %1605 = sbr.rel (%p1603) target = $region84
        $region83: #{tpu_custom_call.1} parent=71 // pred_region
          %s1606 = sand.u32 %s31, 1
          %s1607 = scalar_lea.sflag [#allocation12], %s1606
          %s1608 = sand.u32 %s221, 1
          %s1609 = smul.addr %s1608, 32
          %s1610 = scalar_lea.vmem [#allocation13], %s1609
          %1611 = dma.done %s1607, 512
        $region84: #{tpu_custom_call.1} parent=71 // pred_fallthru
          _
      $region72: #{tpu_custom_call.1} parent=5 // pred_fallthru
        _
    $region6: #{tpu_custom_call.1} parent=1 // loop_footer
      %s29 = sadd.s32 1, %s25
    $region7: #{tpu_custom_call.1} parent=1 // loop_footer_branch
      %24 = sbr.rel target = $region3
    $region8: #{tpu_custom_call.1} parent=1 // loop_exit
      _
    %1612 = vsyncpa [#allocation3], 1
    %s1613 = scalar_lea.sflag [#allocation3], 1
    %1614 = vsyncpa %s1613, 1
    %1615 = vsyncpa [#allocation6], 1
    %1616 = vsyncpa [#allocation9], 1
    %1617 = vsyncpa [#allocation4], 1
    %s1618 = scalar_lea.sflag [#allocation4], 1
    %1619 = vsyncpa %s1618, 1
    %1620 = vsyncpa [#allocation12], 1
    %s1621 = scalar_lea.sflag [#allocation12], 1
    %1622 = vsyncpa %s1621, 1

</llo_original>
